<compile_context>
chip_gen: v5e
topology: v5e:2x2
jax: 0.10.0
libtpu: 0.0.40
codegen_flags: <defaults>
</compile_context>

<pallas_src>
import functools
import math

import jax
import jax.numpy as jnp
import numpy as np
from jax import lax
from jax.experimental import pallas as pl
from jax.experimental.pallas import tpu as pltpu


def _cdiv(a, b):
    return -(-a // b)


def _round_up(x, m):
    return _cdiv(x, m) * m


# ---------------------------------------------------------------------------
# Kernel A: packed / MXU path (model_dim not a multiple of 128).
# ---------------------------------------------------------------------------
def _pe_kernel_mxu(p_ref, e_ref, out_ref, *, log_min, inv_log_range, k):
    # p_ref:   (TR, 2k)   duplicated periods: columns [0,k) == columns [k,2k)
    # e_ref:   (2k, LW)   fused table: rows [0,k) -> div_term per group,
    #                                   rows [k,2k) -> phase (0 / pi/2) per group
    # out_ref: (TR, LW)   LW = k * model_dim (multiple of 128 -> unmasked stores)
    p = p_ref[...]
    valid = (p > 0.0) & (p == p)                        # complement of (<=0 | NaN)
    pn = (jnp.log(jnp.where(valid, p, 1.0)) - log_min) * inv_log_range
    pn = jnp.where(valid, pn, 0.0)                      # exact 0 for invalid rows
    one = jnp.where(valid, 1.0, 0.0)                    # validity mask as f32
    lane = lax.broadcasted_iota(jnp.int32, p.shape, 1)
    lhs = jnp.where(lane < k, pn, one)                  # (TR, 2k) = [pn | mask]

    # Single fused dot: angle = pn*div + mask*phase for every output lane.
    # Invalid periods -> pn = mask = 0 -> angle = 0 -> sin(0) = 0 (all lanes).
    angle = jnp.dot(lhs, e_ref[...], preferred_element_type=jnp.float32)
    out_ref[...] = jnp.sin(angle).astype(out_ref.dtype)
    # TODO(synk): if jnp.sin lowers to a long VALU polynomial, a bounded-domain
    # minimax polynomial (with explicit range handling for out-of-range periods)
    # could cut the remaining VALU cost further.


# ---------------------------------------------------------------------------
# Kernel B: broadcast / VPU path (model_dim % 128 == 0): no MXU work at all.
# ---------------------------------------------------------------------------
def _pe_kernel_vpu(p_ref, div_ref, phase_ref, out_ref, *, log_min, inv_log_range):
    # p_ref: (TR, 1); div_ref/phase_ref: (1, D); out_ref: (TR, D)
    p = p_ref[...]
    valid = (p > 0.0) & (p == p)
    pn = (jnp.log(jnp.where(valid, p, 1.0)) - log_min) * inv_log_range
    pn = jnp.where(valid, pn, 0.0)
    mask = jnp.where(valid, 1.0, 0.0)
    # (TR,1) x (1,D) lane/sublane broadcasts — the whole "expansion" on the VPU.
    angle = pn * div_ref[...] + mask * phase_ref[...]
    out_ref[...] = jnp.sin(angle).astype(out_ref.dtype)


# ---------------------------------------------------------------------------
# Wrapper
# ---------------------------------------------------------------------------
def period_positional_encoding(periods, model_dim, min_period=0.005,
                               max_period=200.0, out_dtype=jnp.float32):
    """periods: (B, S) -> (B, S, model_dim); Pallas-TPU forward pass."""
    assert model_dim % 2 == 0, "model_dim must be even (sin/cos interleave)"
    D = int(model_dim)
    periods = periods.astype(jnp.float32)
    B, S = periods.shape
    N = B * S

    log_min = math.log(float(min_period))
    log_max = math.log(float(max_period))
    inv_log_range = 1.0 / (log_max - log_min)

    ROW_ALIGN = 16                       # tile second-minor: ok for f32 and bf16
    OUT_BLOCK_BYTES = 4 * 1024 * 1024    # ~4 MiB output block per grid step
    out_bytes = jnp.dtype(out_dtype).itemsize

    # Lane-constant tables (host side, built once).
    d = np.arange(D)
    div_row = np.exp(-(2.0 * (d // 2)) * (math.log(10000.0) / D)).astype(np.float32)
    phase_row = ((d % 2) * (math.pi / 2.0)).astype(np.float32)

    # --- choose packing ----------------------------------------------------
    if D % 128 == 0:
        use_mxu = False                  # review: skip the matmul, pure broadcast
        k = 1
    else:
        k0 = 128 // math.gcd(D, 128)     # minimal k with (k*D) % 128 == 0
        if k0 * D > 4096:
            # TODO(synk): pathological model_dim — fall back to the unpacked path
            # (outputs narrower than a 128 multiple use masked stores there).
            use_mxu = False
            k = 1
        else:
            use_mxu = True
            # grow k toward lane_w ~= 1024 so the periods block is (mostly)
            # lane-dense; keep the contraction 2k <= 128 (single MXU pass).
            m = max(1, min(1024 // (k0 * D), 64 // k0))
            k = k0 * m
    lane_w = k * D

    # --- row tiling ---------------------------------------------------------
    n_pack = _cdiv(N, k)
    budget_rows = max(ROW_ALIGN,
                      (OUT_BLOCK_BYTES // (lane_w * out_bytes)) // ROW_ALIGN * ROW_ALIGN)
    tile_rows = min(budget_rows, _round_up(n_pack, ROW_ALIGN))
    if n_pack > ROW_ALIGN and _cdiv(n_pack, tile_rows) == 1:
        # keep >= 2 grid steps so v7x's two TensorCores both get work
        tile_rows = _round_up(_cdiv(n_pack, 2), ROW_ALIGN)
    n_pad = _cdiv(n_pack, tile_rows) * tile_rows
    grid = (n_pad // tile_rows,)

    # pack + pad periods (pad with min_period; padded rows are sliced away)
    flat = jnp.pad(periods.reshape(-1), (0, n_pad * k - N),
                   constant_values=float(min_period))
    packed = flat.reshape(n_pad, k)

    flops = 2 * n_pad * (2 * k) * lane_w if use_mxu else 3 * n_pad * lane_w
    cost = pl.CostEstimate(
        flops=int(flops),
        transcendentals=int(n_pad * lane_w + n_pad * 2 * k),
        bytes_accessed=int(n_pad * lane_w * out_bytes + n_pad * 2 * k * 4),
    )
    cparams = pltpu.CompilerParams(
        dimension_semantics=("parallel",),
        vmem_limit_bytes=32 * 1024 * 1024,
    )

    if use_mxu:
        # duplicated periods -> one fused (TR,2k) x (2k,LW) dot yields the angle
        packed2 = jnp.concatenate([packed, packed], axis=1)          # (n_pad, 2k)
        e = np.zeros((2 * k, lane_w), np.float32)
        for g in range(k):
            e[g, g * D:(g + 1) * D] = div_row                        # frequency
            e[k + g, g * D:(g + 1) * D] = phase_row                  # mask-gated phase
        e = jnp.asarray(e)

        kernel = functools.partial(_pe_kernel_mxu, log_min=log_min,
                                   inv_log_range=inv_log_range, k=k)
        out = pl.pallas_call(
            kernel,
            out_shape=jax.ShapeDtypeStruct((n_pad, lane_w), out_dtype),
            grid_spec=pltpu.PrefetchScalarGridSpec(
                num_scalar_prefetch=0,
                grid=grid,
                in_specs=[
                    pl.BlockSpec((tile_rows, 2 * k), lambda i: (i, 0)),
                    pl.BlockSpec((2 * k, lane_w), lambda i: (0, 0)),
                ],
                out_specs=pl.BlockSpec((tile_rows, lane_w), lambda i: (i, 0)),
            ),
            compiler_params=cparams,
            cost_estimate=cost,
        )(packed2, e)
    else:
        div_tab = jnp.asarray(div_row[None, :])                      # (1, D)
        phase_tab = jnp.asarray(phase_row[None, :])                  # (1, D)
        kernel = functools.partial(_pe_kernel_vpu, log_min=log_min,
                                   inv_log_range=inv_log_range)
        out = pl.pallas_call(
            kernel,
            out_shape=jax.ShapeDtypeStruct((n_pad, lane_w), out_dtype),
            grid_spec=pltpu.PrefetchScalarGridSpec(
                num_scalar_prefetch=0,
                grid=grid,
                in_specs=[
                    pl.BlockSpec((tile_rows, 1), lambda i: (i, 0)),
                    pl.BlockSpec((1, lane_w), lambda i: (0, 0)),
                    pl.BlockSpec((1, lane_w), lambda i: (0, 0)),
                ],
                out_specs=pl.BlockSpec((tile_rows, lane_w), lambda i: (i, 0)),
            ),
            compiler_params=cparams,
            cost_estimate=cost,
        )(packed, div_tab, phase_tab)

    # Unpack: (n_pad, k*D) -> (n_pad*k, D) -> (B, S, D); pure reshape + slice.
    return out.reshape(n_pad * k, D)[:N].reshape(B, S, D)


# ---------------------------------------------------------------------------
# Pure-JAX reference (mirrors the PyTorch module)
# ---------------------------------------------------------------------------
def _reference(periods, model_dim, min_period=0.005, max_period=200.0):
    periods = periods.astype(jnp.float32)
    invalid = (periods <= 0) | jnp.isnan(periods)
    valid = jnp.where(invalid, min_period, periods)
    pn = (jnp.log(valid) - jnp.log(min_period)) / (jnp.log(max_period) - jnp.log(min_period))
    position = pn[..., None]
    div_term = jnp.exp(jnp.arange(0, model_dim, 2, dtype=jnp.float32)
                       * (-jnp.log(10000.0) / model_dim))
    sin = jnp.sin(position * div_term)
    cos = jnp.cos(position * div_term)
    pe = jnp.stack([sin, cos], axis=-1).reshape(periods.shape[0], periods.shape[1], model_dim)
    return jnp.where(invalid[..., None], 0.0, pe)


if __name__ == "__main__":
    key = jax.random.PRNGKey(0)

    # Test 1: small shapes, D=32 (packed MXU path), with invalid entries.
    B, S, D = 2, 8, 32
    periods = jax.random.uniform(key, (B, S), minval=0.001, maxval=150.0,
                                 dtype=jnp.float32)
    periods = periods.at[0, 0].set(0.0)          # invalid: <= 0
    periods = periods.at[0, 1].set(-3.0)         # invalid: negative
    periods = periods.at[1, 2].set(jnp.nan)      # invalid: NaN

    out = jax.block_until_ready(period_positional_encoding(periods, D))
    ref = _reference(periods, D)
    assert out.shape == (B, S, D)
    assert jnp.allclose(out, ref, atol=1e-5, rtol=1e-5)

    # Test 2: wide model_dim (VPU broadcast path) + row count needing padding.
    B2, S2, D2 = 2, 37, 256
    periods2 = jax.random.uniform(jax.random.PRNGKey(1), (B2, S2),
                                  minval=0.001, maxval=300.0, dtype=jnp.float32)
    periods2 = periods2.at[1, 5].set(-1.0)
    out2 = jax.block_until_ready(period_positional_encoding(periods2, D2))
    ref2 = _reference(periods2, D2)
    assert out2.shape == (B2, S2, D2)
    assert jnp.allclose(out2, ref2, atol=1e-5, rtol=1e-5)

    # Test 3: enough rows to exercise a multi-step "parallel" grid (MXU path).
    B3, S3, D3 = 4, 1024, 32
    periods3 = jax.random.uniform(jax.random.PRNGKey(2), (B3, S3),
                                  minval=0.001, maxval=150.0, dtype=jnp.float32)
    periods3 = periods3.at[0, 7].set(jnp.nan)
    out3 = jax.block_until_ready(period_positional_encoding(periods3, D3))
    ref3 = _reference(periods3, D3)
    assert out3.shape == (B3, S3, D3)
    assert jnp.allclose(out3, ref3, atol=1e-5, rtol=1e-5)

    print("KERNEL_OK")
</pallas_src>

<mosaic_0001>
module attributes {stable_mosaic.version = 11 : i64} {
  func.func @_pe_kernel_mxu(%arg0: i32, %arg1: memref<16x64xf32, #tpu.memory_space<vmem>>, %arg2: memref<64x1024xf32, #tpu.memory_space<vmem>>, %arg3: memref<16x1024xf32, #tpu.memory_space<vmem>>) attributes {dimension_semantics = [#tpu.dimension_semantics<parallel>], iteration_bounds = array<i64: 1>, scalar_prefetch = 0 : i64, scratch_operands = 0 : i64, tpu.core_type = #tpu.core_type<tc>, window_params = [{transform_indices = @transform_0, window_bounds = array<i64: 16, 64>}, {pipeline_mode = #tpu.pipeline_mode<synchronous>, transform_indices = @transform_1, window_bounds = array<i64: 64, 1024>}, {transform_indices = @transform_2, window_bounds = array<i64: 16, 1024>}]} {
    %c0 = arith.constant 0 : index
    %c0_0 = arith.constant 0 : index
    %0 = vector.load %arg1[%c0, %c0_0] : memref<16x64xf32, #tpu.memory_space<vmem>>, vector<16x64xf32>
    %cst = arith.constant 0.000000e+00 : f32
    %1 = vector.broadcast %cst : f32 to vector<16x64xf32>
    %2 = arith.cmpf ogt, %0, %1 : vector<16x64xf32>
    %3 = arith.cmpf oeq, %0, %0 : vector<16x64xf32>
    %4 = arith.andi %2, %3 : vector<16x64xi1>
    %cst_1 = arith.constant 1.000000e+00 : f32
    %5 = vector.broadcast %cst_1 : f32 to vector<16x64xf32>
    %6 = arith.select %4, %0, %5 : vector<16x64xi1>, vector<16x64xf32>
    %7 = math.log %6 : vector<16x64xf32>
    %cst_2 = arith.constant -5.29831743 : f32
    %8 = vector.broadcast %cst_2 : f32 to vector<16x64xf32>
    %9 = arith.subf %7, %8 : vector<16x64xf32>
    %cst_3 = arith.constant 0.0943695828 : f32
    %10 = vector.broadcast %cst_3 : f32 to vector<16x64xf32>
    %11 = arith.mulf %9, %10 : vector<16x64xf32>
    %cst_4 = arith.constant 0.000000e+00 : f32
    %12 = vector.broadcast %cst_4 : f32 to vector<16x64xf32>
    %13 = arith.select %4, %11, %12 : vector<16x64xi1>, vector<16x64xf32>
    %cst_5 = arith.constant 1.000000e+00 : f32
    %cst_6 = arith.constant 0.000000e+00 : f32
    %14 = vector.broadcast %cst_5 : f32 to vector<16x64xf32>
    %15 = vector.broadcast %cst_6 : f32 to vector<16x64xf32>
    %16 = arith.select %4, %14, %15 : vector<16x64xi1>, vector<16x64xf32>
    %17 = tpu.iota {dimensions = array<i32: 1>} : vector<16x64xi32>
    %c32_i32 = arith.constant 32 : i32
    %18 = vector.broadcast %c32_i32 : i32 to vector<16x64xi32>
    %19 = arith.cmpi slt, %17, %18 : vector<16x64xi32>
    %20 = arith.select %19, %13, %16 : vector<16x64xi1>, vector<16x64xf32>
    %c0_7 = arith.constant 0 : index
    %c0_8 = arith.constant 0 : index
    %21 = vector.load %arg2[%c0_7, %c0_8] : memref<64x1024xf32, #tpu.memory_space<vmem>>, vector<64x1024xf32>
    %cst_9 = arith.constant dense<0.000000e+00> : vector<16x1024xf32>
    %22 = tpu.matmul %20, %21, %cst_9 {dimension_numbers = #tpu.dot_dimension_numbers<[1], [0], [0], [1], [0, 0, 1, 1], [], []>} : vector<16x64xf32>, vector<64x1024xf32>, vector<16x1024xf32> -> vector<16x1024xf32>
    %23 = math.sin %22 : vector<16x1024xf32>
    %c0_10 = arith.constant 0 : index
    %c0_11 = arith.constant 0 : index
    %24 = vector.load %arg3[%c0_10, %c0_11] : memref<16x1024xf32, #tpu.memory_space<vmem>>, vector<16x1024xf32>
    tpu.vector_store %arg3[%c0_10, %c0_11], %23 {strides = array<i32>} : memref<16x1024xf32, #tpu.memory_space<vmem>>, vector<16x1024xf32>,
    return
  }
  func.func @transform_0(%arg0: i32) -> (i32, i32) {
    %c0_i32 = arith.constant 0 : i32
    %c0_i32_0 = arith.constant 0 : i32
    return %arg0, %c0_i32 : i32, i32
  }
  func.func @transform_1(%arg0: i32) -> (i32, i32) {
    %c0_i32 = arith.constant 0 : i32
    %c0_i32_0 = arith.constant 0 : i32
    %c0_i32_1 = arith.constant 0 : i32
    return %c0_i32, %c0_i32_0 : i32, i32
  }
  func.func @transform_2(%arg0: i32) -> (i32, i32) {
    %c0_i32 = arith.constant 0 : i32
    %c0_i32_0 = arith.constant 0 : i32
    return %arg0, %c0_i32 : i32, i32
  }
}

</mosaic_0001>

<llo_original>
// kernel: tpu_custom_call.1
$region0: #{tpu_custom_call.1}
  #allocation0 [shape = 'u32[]', space=smem, size = 0x4, offset = 0x4, fixed_abs, tag = 'smem constant byte address 0x4 - core index']
  #allocation1 [shape = 'u32[72,128]{1,0:T(1,128)}', space=vmem, size = 0x9000, scoped, tag = 'internal scratch']
  %s0 = inlined_call_operand.hbm [shape: f32[16,64], index: 0, kind: input, shape index: {}]
  %s1 = inlined_call_operand.hbm [shape: f32[64,1024], index: 1, kind: input, shape index: {}]
  %s2 = inlined_call_operand.hbm [shape: f32[16,1024], index: 2, kind: output, shape index: {}]
  %s3 = sld [smem:[#allocation0]]
  $region26: #{tpu_custom_call.1} parent=0
    _
  %s5 = ssub.s32 1, %s3
  %s6 = scalar_select 0, %s5, %s3
  $region1: #{tpu_custom_call.1} parent=0
    #allocation2 [shape = 'u8[8192]{0}', space=vmem, size = 0x2000, scoped, tag = 'input window, operand 0, single buffered']
    #allocation3 [shape = 's32[1]{0}', space=sflag, size = 0x4, scoped, tag = 'scoped memory for tpu_custom_call.1']
    #allocation4 [shape = 's32[1]{0}', space=sflag, size = 0x4, scoped, tag = 'scoped memory for tpu_custom_call.1']
    #allocation5 [shape = 'u8[262144]{0}', space=vmem, size = 0x40000, scoped, tag = 'input window, operand 1, single buffered']
    #allocation6 [shape = 's32[1]{0}', space=sflag, size = 0x4, scoped, tag = 'scoped memory for tpu_custom_call.1']
    #allocation7 [shape = 'u8[65536]{0}', space=vmem, size = 0x10000, scoped, tag = 'output window, operand 0, single buffered']
    %7 = vsyncpa [#allocation3], 0
    %8 = vsyncpa [#allocation6], 0
    %9 = vsyncpa [#allocation4], 0
    // Predicated region
    $region2: #{tpu_custom_call.1} parent=1 // pred_check
      _
    $region3: #{tpu_custom_call.1} parent=1 // pred_check_branch
      %11 = sbr.rel (0) target = $region5
    $region4: #{tpu_custom_call.1} parent=1 // pred_region
      %13 = vsyncadd [#allocation3], 0
      %s14 = sshll.u32 %s0, 4
      %s15 = int_to_ptr.hbm [resolvable:$true] %s14
      %s16 = sshll.u32 [#allocation2], 4
      %s17 = int_to_ptr.vmem [resolvable:$true] %s16
      %22 = dma.hbm_to_vmem [thread:$0]  %s15, 256, %s17, [#allocation3], 128, 128, 8
    $region5: #{tpu_custom_call.1} parent=1 // pred_fallthru
      _
    // Predicated region
    $region6: #{tpu_custom_call.1} parent=1 // pred_check
      _
    $region7: #{tpu_custom_call.1} parent=1 // pred_check_branch
      %24 = sbr.rel (0) target = $region9
    $region8: #{tpu_custom_call.1} parent=1 // pred_region
      %26 = vsyncadd [#allocation6], 0
      %s27 = sshll.u32 %s1, 4
      %s28 = int_to_ptr.hbm [resolvable:$true] %s27
      %s29 = sshll.u32 [#allocation5], 4
      %s30 = int_to_ptr.vmem [resolvable:$true] %s29
      %35 = dma.hbm_to_vmem [thread:$0]  %s28, 8192, %s30, [#allocation6], 1024, 1024, 64
    $region9: #{tpu_custom_call.1} parent=1 // pred_fallthru
      _
    // Predicated region
    $region10: #{tpu_custom_call.1} parent=1 // pred_check
      _
    $region11: #{tpu_custom_call.1} parent=1 // pred_check_branch
      %37 = sbr.rel (0) target = $region13
    $region12: #{tpu_custom_call.1} parent=1 // pred_region
      %39 = dma.done [#allocation3], 256
    $region13: #{tpu_custom_call.1} parent=1 // pred_fallthru
      _
    // Predicated region
    $region14: #{tpu_custom_call.1} parent=1 // pred_check
      _
    $region15: #{tpu_custom_call.1} parent=1 // pred_check_branch
      %41 = sbr.rel (0) target = $region17
    $region16: #{tpu_custom_call.1} parent=1 // pred_region
      %43 = dma.done [#allocation6], 8192
    $region17: #{tpu_custom_call.1} parent=1 // pred_fallthru
      _
    %v44 = vld [vmem:[#allocation2] sm:$0xff]
    %v45 = vld [vmem:[#allocation2 + $0x8] sm:$0xff]
    %vm46 = vcmp.gt.f32.partialorder %v44, 0.0
    %vm47 = vcmp.gt.f32.partialorder %v45, 0.0
    %vm48 = vcmp.eq.f32.partialorder %v44, %v44
    %vm49 = vcmp.eq.f32.partialorder %v45, %v45
    %vm50 = vmand %vm46, %vm48
    %vm51 = vmand %vm47, %vm49
    %v52 = vsel %vm50, %v44, 1.0
    %v53 = vsel %vm51, %v45, 1.0
    %v54 = vlog2.pop %v52
    %v55 = vmul.f32 %v54, 0.6931472
    %v56 = vlog2.pop %v53
    %v57 = vmul.f32 %v56, 0.6931472
    %v58 = vsub.f32 %v55, -5.2983174
    %v59 = vsub.f32 %v57, -5.2983174
    %v60 = vmul.f32 %v58, 0.09436958
    %v61 = vmul.f32 %v59, 0.09436958
    %v62 = vsel %vm50, %v60, 0.0
    %v63 = vsel %vm51, %v61, 0.0
    %v64 = vsel %vm50, 1.0, 0.0
    %v65 = vsel %vm51, 1.0, 0.0
    %v66 = vlaneseq
    %v67 = vand.u32 %v66, 127
    %vm68 = vcmp.lt.s32.totalorder %v67, 32
    %v69 = vsel %vm68, %v62, %v64
    %v70 = vsel %vm68, %v63, %v65
    %v71 = vld [vmem:[#allocation5] sm:$0xff]
    %v72 = vld [vmem:[#allocation5 + $0x8] sm:$0xff]
    %v73 = vld [vmem:[#allocation5 + $0x10] sm:$0xff]
    %v74 = vld [vmem:[#allocation5 + $0x18] sm:$0xff]
    %v75 = vld [vmem:[#allocation5 + $0x20] sm:$0xff]
    %v76 = vld [vmem:[#allocation5 + $0x28] sm:$0xff]
    %v77 = vld [vmem:[#allocation5 + $0x30] sm:$0xff]
    %v78 = vld [vmem:[#allocation5 + $0x38] sm:$0xff]
    %v79 = vld [vmem:[#allocation5 + $0x40] sm:$0xff]
    %v80 = vld [vmem:[#allocation5 + $0x48] sm:$0xff]
    %v81 = vld [vmem:[#allocation5 + $0x50] sm:$0xff]
    %v82 = vld [vmem:[#allocation5 + $0x58] sm:$0xff]
    %v83 = vld [vmem:[#allocation5 + $0x60] sm:$0xff]
    %v84 = vld [vmem:[#allocation5 + $0x68] sm:$0xff]
    %v85 = vld [vmem:[#allocation5 + $0x70] sm:$0xff]
    %v86 = vld [vmem:[#allocation5 + $0x78] sm:$0xff]
    %v87 = vld [vmem:[#allocation5 + $0x80] sm:$0xff]
    %v88 = vld [vmem:[#allocation5 + $0x88] sm:$0xff]
    %v89 = vld [vmem:[#allocation5 + $0x90] sm:$0xff]
    %v90 = vld [vmem:[#allocation5 + $0x98] sm:$0xff]
    %v91 = vld [vmem:[#allocation5 + $0xa0] sm:$0xff]
    %v92 = vld [vmem:[#allocation5 + $0xa8] sm:$0xff]
    %v93 = vld [vmem:[#allocation5 + $0xb0] sm:$0xff]
    %v94 = vld [vmem:[#allocation5 + $0xb8] sm:$0xff]
    %v95 = vld [vmem:[#allocation5 + $0xc0] sm:$0xff]
    %v96 = vld [vmem:[#allocation5 + $0xc8] sm:$0xff]
    %v97 = vld [vmem:[#allocation5 + $0xd0] sm:$0xff]
    %v98 = vld [vmem:[#allocation5 + $0xd8] sm:$0xff]
    %v99 = vld [vmem:[#allocation5 + $0xe0] sm:$0xff]
    %v100 = vld [vmem:[#allocation5 + $0xe8] sm:$0xff]
    %v101 = vld [vmem:[#allocation5 + $0xf0] sm:$0xff]
    %v102 = vld [vmem:[#allocation5 + $0xf8] sm:$0xff]
    %v103 = vld [vmem:[#allocation5 + $0x100] sm:$0xff]
    %v104 = vld [vmem:[#allocation5 + $0x108] sm:$0xff]
    %v105 = vld [vmem:[#allocation5 + $0x110] sm:$0xff]
    %v106 = vld [vmem:[#allocation5 + $0x118] sm:$0xff]
    %v107 = vld [vmem:[#allocation5 + $0x120] sm:$0xff]
    %v108 = vld [vmem:[#allocation5 + $0x128] sm:$0xff]
    %v109 = vld [vmem:[#allocation5 + $0x130] sm:$0xff]
    %v110 = vld [vmem:[#allocation5 + $0x138] sm:$0xff]
    %v111 = vld [vmem:[#allocation5 + $0x140] sm:$0xff]
    %v112 = vld [vmem:[#allocation5 + $0x148] sm:$0xff]
    %v113 = vld [vmem:[#allocation5 + $0x150] sm:$0xff]
    %v114 = vld [vmem:[#allocation5 + $0x158] sm:$0xff]
    %v115 = vld [vmem:[#allocation5 + $0x160] sm:$0xff]
    %v116 = vld [vmem:[#allocation5 + $0x168] sm:$0xff]
    %v117 = vld [vmem:[#allocation5 + $0x170] sm:$0xff]
    %v118 = vld [vmem:[#allocation5 + $0x178] sm:$0xff]
    %v119 = vld [vmem:[#allocation5 + $0x180] sm:$0xff]
    %v120 = vld [vmem:[#allocation5 + $0x188] sm:$0xff]
    %v121 = vld [vmem:[#allocation5 + $0x190] sm:$0xff]
    %v122 = vld [vmem:[#allocation5 + $0x198] sm:$0xff]
    %v123 = vld [vmem:[#allocation5 + $0x1a0] sm:$0xff]
    %v124 = vld [vmem:[#allocation5 + $0x1a8] sm:$0xff]
    %v125 = vld [vmem:[#allocation5 + $0x1b0] sm:$0xff]
    %v126 = vld [vmem:[#allocation5 + $0x1b8] sm:$0xff]
    %v127 = vld [vmem:[#allocation5 + $0x1c0] sm:$0xff]
    %v128 = vld [vmem:[#allocation5 + $0x1c8] sm:$0xff]
    %v129 = vld [vmem:[#allocation5 + $0x1d0] sm:$0xff]
    %v130 = vld [vmem:[#allocation5 + $0x1d8] sm:$0xff]
    %v131 = vld [vmem:[#allocation5 + $0x1e0] sm:$0xff]
    %v132 = vld [vmem:[#allocation5 + $0x1e8] sm:$0xff]
    %v133 = vld [vmem:[#allocation5 + $0x1f0] sm:$0xff]
    %v134 = vld [vmem:[#allocation5 + $0x1f8] sm:$0xff]
    %vm135 = vcmask 523264
    %v137 = vsel %vm135, %v69, 0
    %v140 = vsel %vm135, %v70, 0
    %142 = vmatpush.msra.mxu0 0.0
    %143 = vmatpush.msra.mxu0 0.0
    %144 = vmatpush.msra.mxu0 0.0
    %145 = vmatpush.msra.mxu0 0.0
    %146 = vmatpush.msra.mxu0 0.0
    %147 = vmatpush.msra.mxu0 0.0
    %148 = vmatpush.msra.mxu0 0.0
    %149 = vmatpush.msra.mxu0 0.0
    %150 = vmatpush.msra.mxu0 %v127
    %151 = vmatpush.msra.mxu0 %v119
    %152 = vmatpush.msra.mxu0 %v111
    %153 = vmatpush.msra.mxu0 %v103
    %154 = vmatpush.msra.mxu0 %v95
    %155 = vmatpush.msra.mxu0 %v87
    %156 = vmatpush.msra.mxu0 %v79
    %157 = vmatpush.msra.mxu0 %v71
    %158 = vmatmul.f32.gmra.mxu0 %v137
    %v159 = vpop.f32.mrf.mxu0
    %v160 = vadd.f32 0.0, %v159
    %161 = vmatmul.f32.gmra.mxu0 %v140
    %v162 = vpop.f32.mrf.mxu0
    %v163 = vadd.f32 0.0, %v162
    %164 = vdwg.mxu0
    %165 = vmatpush.msra.mxu0 0.0
    %166 = vmatpush.msra.mxu0 0.0
    %167 = vmatpush.msra.mxu0 0.0
    %168 = vmatpush.msra.mxu0 0.0
    %169 = vmatpush.msra.mxu0 0.0
    %170 = vmatpush.msra.mxu0 0.0
    %171 = vmatpush.msra.mxu0 0.0
    %172 = vmatpush.msra.mxu0 0.0
    %173 = vmatpush.msra.mxu0 %v128
    %174 = vmatpush.msra.mxu0 %v120
    %175 = vmatpush.msra.mxu0 %v112
    %176 = vmatpush.msra.mxu0 %v104
    %177 = vmatpush.msra.mxu0 %v96
    %178 = vmatpush.msra.mxu0 %v88
    %179 = vmatpush.msra.mxu0 %v80
    %180 = vmatpush.msra.mxu0 %v72
    %181 = vmatmul.f32.gmra.mxu0 %v137
    %v182 = vpop.f32.mrf.mxu0
    %v183 = vadd.f32 0.0, %v182
    %184 = vmatmul.f32.gmra.mxu0 %v140
    %v185 = vpop.f32.mrf.mxu0
    %v186 = vadd.f32 0.0, %v185
    %187 = vdwg.mxu0
    %188 = vmatpush.msra.mxu0 0.0
    %189 = vmatpush.msra.mxu0 0.0
    %190 = vmatpush.msra.mxu0 0.0
    %191 = vmatpush.msra.mxu0 0.0
    %192 = vmatpush.msra.mxu0 0.0
    %193 = vmatpush.msra.mxu0 0.0
    %194 = vmatpush.msra.mxu0 0.0
    %195 = vmatpush.msra.mxu0 0.0
    %196 = vmatpush.msra.mxu0 %v129
    %197 = vmatpush.msra.mxu0 %v121
    %198 = vmatpush.msra.mxu0 %v113
    %199 = vmatpush.msra.mxu0 %v105
    %200 = vmatpush.msra.mxu0 %v97
    %201 = vmatpush.msra.mxu0 %v89
    %202 = vmatpush.msra.mxu0 %v81
    %203 = vmatpush.msra.mxu0 %v73
    %204 = vmatmul.f32.gmra.mxu0 %v137
    %v205 = vpop.f32.mrf.mxu0
    %v206 = vadd.f32 0.0, %v205
    %207 = vmatmul.f32.gmra.mxu0 %v140
    %v208 = vpop.f32.mrf.mxu0
    %v209 = vadd.f32 0.0, %v208
    %210 = vdwg.mxu0
    %211 = vmatpush.msra.mxu0 0.0
    %212 = vmatpush.msra.mxu0 0.0
    %213 = vmatpush.msra.mxu0 0.0
    %214 = vmatpush.msra.mxu0 0.0
    %215 = vmatpush.msra.mxu0 0.0
    %216 = vmatpush.msra.mxu0 0.0
    %217 = vmatpush.msra.mxu0 0.0
    %218 = vmatpush.msra.mxu0 0.0
    %219 = vmatpush.msra.mxu0 %v130
    %220 = vmatpush.msra.mxu0 %v122
    %221 = vmatpush.msra.mxu0 %v114
    %222 = vmatpush.msra.mxu0 %v106
    %223 = vmatpush.msra.mxu0 %v98
    %224 = vmatpush.msra.mxu0 %v90
    %225 = vmatpush.msra.mxu0 %v82
    %226 = vmatpush.msra.mxu0 %v74
    %227 = vmatmul.f32.gmra.mxu0 %v137
    %v228 = vpop.f32.mrf.mxu0
    %v229 = vadd.f32 0.0, %v228
    %230 = vmatmul.f32.gmra.mxu0 %v140
    %v231 = vpop.f32.mrf.mxu0
    %v232 = vadd.f32 0.0, %v231
    %233 = vdwg.mxu0
    %234 = vmatpush.msra.mxu0 0.0
    %235 = vmatpush.msra.mxu0 0.0
    %236 = vmatpush.msra.mxu0 0.0
    %237 = vmatpush.msra.mxu0 0.0
    %238 = vmatpush.msra.mxu0 0.0
    %239 = vmatpush.msra.mxu0 0.0
    %240 = vmatpush.msra.mxu0 0.0
    %241 = vmatpush.msra.mxu0 0.0
    %242 = vmatpush.msra.mxu0 %v131
    %243 = vmatpush.msra.mxu0 %v123
    %244 = vmatpush.msra.mxu0 %v115
    %245 = vmatpush.msra.mxu0 %v107
    %246 = vmatpush.msra.mxu0 %v99
    %247 = vmatpush.msra.mxu0 %v91
    %248 = vmatpush.msra.mxu0 %v83
    %249 = vmatpush.msra.mxu0 %v75
    %250 = vmatmul.f32.gmra.mxu0 %v137
    %v251 = vpop.f32.mrf.mxu0
    %v252 = vadd.f32 0.0, %v251
    %253 = vmatmul.f32.gmra.mxu0 %v140
    %v254 = vpop.f32.mrf.mxu0
    %v255 = vadd.f32 0.0, %v254
    %256 = vdwg.mxu0
    %257 = vmatpush.msra.mxu0 0.0
    %258 = vmatpush.msra.mxu0 0.0
    %259 = vmatpush.msra.mxu0 0.0
    %260 = vmatpush.msra.mxu0 0.0
    %261 = vmatpush.msra.mxu0 0.0
    %262 = vmatpush.msra.mxu0 0.0
    %263 = vmatpush.msra.mxu0 0.0
    %264 = vmatpush.msra.mxu0 0.0
    %265 = vmatpush.msra.mxu0 %v132
    %266 = vmatpush.msra.mxu0 %v124
    %267 = vmatpush.msra.mxu0 %v116
    %268 = vmatpush.msra.mxu0 %v108
    %269 = vmatpush.msra.mxu0 %v100
    %270 = vmatpush.msra.mxu0 %v92
    %271 = vmatpush.msra.mxu0 %v84
    %272 = vmatpush.msra.mxu0 %v76
    %273 = vmatmul.f32.gmra.mxu0 %v137
    %v274 = vpop.f32.mrf.mxu0
    %v275 = vadd.f32 0.0, %v274
    %276 = vmatmul.f32.gmra.mxu0 %v140
    %v277 = vpop.f32.mrf.mxu0
    %v278 = vadd.f32 0.0, %v277
    %279 = vdwg.mxu0
    %280 = vmatpush.msra.mxu0 0.0
    %281 = vmatpush.msra.mxu0 0.0
    %282 = vmatpush.msra.mxu0 0.0
    %283 = vmatpush.msra.mxu0 0.0
    %284 = vmatpush.msra.mxu0 0.0
    %285 = vmatpush.msra.mxu0 0.0
    %286 = vmatpush.msra.mxu0 0.0
    %287 = vmatpush.msra.mxu0 0.0
    %288 = vmatpush.msra.mxu0 %v133
    %289 = vmatpush.msra.mxu0 %v125
    %290 = vmatpush.msra.mxu0 %v117
    %291 = vmatpush.msra.mxu0 %v109
    %292 = vmatpush.msra.mxu0 %v101
    %293 = vmatpush.msra.mxu0 %v93
    %294 = vmatpush.msra.mxu0 %v85
    %295 = vmatpush.msra.mxu0 %v77
    %296 = vmatmul.f32.gmra.mxu0 %v137
    %v297 = vpop.f32.mrf.mxu0
    %v298 = vadd.f32 0.0, %v297
    %299 = vmatmul.f32.gmra.mxu0 %v140
    %v300 = vpop.f32.mrf.mxu0
    %v301 = vadd.f32 0.0, %v300
    %302 = vdwg.mxu0
    %303 = vmatpush.msra.mxu0 0.0
    %304 = vmatpush.msra.mxu0 0.0
    %305 = vmatpush.msra.mxu0 0.0
    %306 = vmatpush.msra.mxu0 0.0
    %307 = vmatpush.msra.mxu0 0.0
    %308 = vmatpush.msra.mxu0 0.0
    %309 = vmatpush.msra.mxu0 0.0
    %310 = vmatpush.msra.mxu0 0.0
    %311 = vmatpush.msra.mxu0 %v134
    %312 = vmatpush.msra.mxu0 %v126
    %313 = vmatpush.msra.mxu0 %v118
    %314 = vmatpush.msra.mxu0 %v110
    %315 = vmatpush.msra.mxu0 %v102
    %316 = vmatpush.msra.mxu0 %v94
    %317 = vmatpush.msra.mxu0 %v86
    %318 = vmatpush.msra.mxu0 %v78
    %319 = vmatmul.f32.gmra.mxu0 %v137
    %v320 = vpop.f32.mrf.mxu0
    %v321 = vadd.f32 0.0, %v320
    %322 = vmatmul.f32.gmra.mxu0 %v140
    %v323 = vpop.f32.mrf.mxu0
    %v324 = vadd.f32 0.0, %v323
    %325 = vdwg.mxu0
    %v326 = vand.u32 2147483647, %v160
    %vm327 = vcmp.le.f32.partialorder %v326, 0.7853982
    %vm328 = vcmp.lt.s32.totalorder %v160, 0
    %v329 = vand.u32 %v160, 2139095040
    %v330 = vshrl.u32 %v329, 23
    %v331 = vsub.s32 %v330, 127
    %v332 = vand.u32 2147483647, %v160
    %v333 = vand.u32 %v332, 8388607
    %v334 = vor.u32 %v333, 8388608
    %v335 = vsub.s32 0, %v334
    %v336 = vadd.s32 %v331, 1
    %vm337 = vcmp.gt.s32.totalorder %v336, 0
    %v338 = vsel %vm337, %v336, 0
    %v339 = vshrl.u32 %v338, 5
    %v340 = vand.u32 %v338, 31
    %v341 = vsub.s32 32, %v340
    %v342 = vshrl.u32 683565275, %v341
    %v343 = vshll.u32 683565275, %v340
    %v344 = vshrl.u32 2475754826, %v341
    %v345 = vor.u32 %v343, %v344
    %v346 = vshll.u32 2475754826, %v340
    %v347 = vshrl.u32 2131351028, %v341
    %v348 = vor.u32 %v346, %v347
    %v349 = vshll.u32 2131351028, %v340
    %v350 = vshrl.u32 2102212464, %v341
    %v351 = vor.u32 %v349, %v350
    %v352 = vshll.u32 2102212464, %v340
    %v353 = vshrl.u32 920167782, %v341
    %v354 = vor.u32 %v352, %v353
    %v355 = vshll.u32 920167782, %v340
    %v356 = vshrl.u32 1326507024, %v341
    %v357 = vor.u32 %v355, %v356
    %vm358 = vcmp.lt.s32.totalorder %v339, 1
    %vm359 = vcmp.lt.s32.totalorder %v339, 2
    %vm360 = vcmp.lt.s32.totalorder %v339, 3
    %vm361 = vcmp.lt.s32.totalorder %v339, 4
    %v362 = vsel %vm358, %v342, %v345
    %v363 = vsel %vm361, %v351, 2102212464
    %v364 = vsel %vm360, %v348, %v363
    %v365 = vsel %vm359, %v362, %v364
    %v366 = vsel %vm358, %v345, %v348
    %v367 = vsel %vm361, %v354, 920167782
    %v368 = vsel %vm360, %v351, %v367
    %v369 = vsel %vm359, %v366, %v368
    %v370 = vsel %vm358, %v348, %v351
    %v371 = vsel %vm361, %v357, 1326507024
    %v372 = vsel %vm360, %v354, %v371
    %v373 = vsel %vm359, %v370, %v372
    %v374 = vshll.u32 %v334, 8
    %v375 = vand.u32 %v374, 65535
    %v376 = vshrl.u32 %v374, 16
    %v377 = vand.u32 %v373, 65535
    %v378 = vshrl.u32 %v373, 16
    %v379 = vmul.u32 %v375, %v377
    %v380 = vmul.u32 %v375, %v378
    %v381 = vmul.u32 %v376, %v377
    %v382 = vmul.u32 %v376, %v378
    %v383 = vshll.u32 %v380, 16
    %v384 = vshrl.u32 %v380, 16
    %v385 = vshll.u32 %v381, 16
    %v386 = vshrl.u32 %v381, 16
    %vm387 = vc.u32 %v379, %v383
    %v388 = vsel %vm387, 1, 0
    %v389 = vadd.s32 %v379, %v383
    %v390 = vadd.s32 %v382, %v388
    %vm391 = vc.u32 %v389, %v385
    %v392 = vsel %vm391, 1, 0
    %v393 = vadd.s32 %v389, %v385
    %v394 = vadd.s32 %v390, %v392
    %v395 = vadd.s32 %v394, %v384
    %v396 = vadd.s32 %v395, %v386
    %v397 = vand.u32 %v374, 65535
    %v398 = vshrl.u32 %v374, 16
    %v399 = vand.u32 %v369, 65535
    %v400 = vshrl.u32 %v369, 16
    %v401 = vmul.u32 %v397, %v399
    %v402 = vmul.u32 %v397, %v400
    %v403 = vmul.u32 %v398, %v399
    %v404 = vmul.u32 %v398, %v400
    %v405 = vshll.u32 %v402, 16
    %v406 = vshrl.u32 %v402, 16
    %v407 = vshll.u32 %v403, 16
    %v408 = vshrl.u32 %v403, 16
    %vm409 = vc.u32 %v401, %v405
    %v410 = vsel %vm409, 1, 0
    %v411 = vadd.s32 %v401, %v405
    %v412 = vadd.s32 %v404, %v410
    %vm413 = vc.u32 %v411, %v407
    %v414 = vsel %vm413, 1, 0
    %v415 = vadd.s32 %v411, %v407
    %v416 = vadd.s32 %v412, %v414
    %v417 = vadd.s32 %v416, %v406
    %v418 = vadd.s32 %v417, %v408
    %v419 = vmul.u32 %v374, %v365
    %v420 = vadd.s32 %v396, %v415
    %vm421 = vc.u32 %v396, %v415
    %v422 = vadd.s32 %v418, 1
    %v423 = vsel %vm421, %v422, %v418
    %v424 = vadd.s32 %v419, %v423
    %v425 = vadd.s32 %v424, 536870912
    %v426 = vshrl.u32 %v425, 30
    %v427 = vshll.u32 %v426, 30
    %v428 = vsub.s32 %v424, %v427
    %vm429 = vcmp.lt.s32.totalorder %v428, 0
    %v430 = vsub.s32 0, %v428
    %v431 = vsel %vm429, %v430, %v428
    %v432 = vclz %v431
    %v433 = vsub.s32 %v432, 2
    %vm434 = vcmp.gt.s32.totalorder 0, %v433
    %v435 = vsel %vm434, 0, %v433
    %v436 = vsub.s32 32, %v435
    %v437 = vshll.u32 %v428, %v435
    %v438 = vshrl.u32 %v420, %v436
    %v439 = vor.u32 %v437, %v438
    %v440 = vsub.s32 4294967266, %v435
    %v441 = vadd.s32 %v440, 127
    %v442 = vshll.u32 %v441, 23
    %v443 = vor.u32 4788187, %v442
    %v444 = vand.u32 2147483647, %v443
    %v446 = vcvt.s32.f32 %v439
    %v447 = vmul.f32 %v446, %v444
    %v448 = vxor.u32 %v447, 2147483648
    %v449 = vsel %vm328, %v448, %v447
    %v450 = vsub.s32 4, %v426
    %v451 = vsel %vm328, %v450, %v426
    %v452 = vsel %vm327, %v160, %v449
    %v453 = vsel %vm327, 0, %v451
    %v454 = vmul.f32 %v452, %v452
    %v455 = vmul.f32 %v454, -0.001358992
    %v456 = vadd.f32 %v455, 0.041655596
    %v457 = vmul.f32 %v454, %v456
    %v458 = vadd.f32 %v457, -0.4999988
    %v459 = vmul.f32 %v454, %v458
    %v460 = vadd.f32 1.0, %v459
    %v461 = vmul.f32 %v452, %v452
    %v462 = vmul.f32 %v461, -0.00019511016
    %v463 = vadd.f32 %v462, 0.008332121
    %v464 = vmul.f32 %v461, %v463
    %v465 = vadd.f32 %v464, -0.16666654
    %v466 = vmul.f32 %v461, %v465
    %v467 = vadd.f32 %v466, 1.0
    %v468 = vmul.f32 %v467, %v452
    %vm469 = vweird.f32 %v160
    %v470 = vadd.s32 %v453, 3
    %v471 = vand.u32 %v470, 3
    %vm472 = vcmp.lt.s32.totalorder %v471, 2
    %vm473 = vcmp.eq.s32.totalorder %v471, 0
    %v474 = vxor.u32 %v468, 2147483648
    %v475 = vsel %vm473, %v460, %v474
    %vm476 = vcmp.eq.s32.totalorder %v471, 2
    %v477 = vxor.u32 %v460, 2147483648
    %v478 = vsel %vm476, %v477, %v468
    %v479 = vsel %vm472, %v475, %v478
    %v480 = vsel %vm469, nan, %v479
    %v481 = vand.u32 2147483647, %v183
    %vm482 = vcmp.le.f32.partialorder %v481, 0.7853982
    %vm483 = vcmp.lt.s32.totalorder %v183, 0
    %v484 = vand.u32 %v183, 2139095040
    %v485 = vshrl.u32 %v484, 23
    %v486 = vsub.s32 %v485, 127
    %v487 = vand.u32 2147483647, %v183
    %v488 = vand.u32 %v487, 8388607
    %v489 = vor.u32 %v488, 8388608
    %v490 = vsub.s32 0, %v489
    %v491 = vadd.s32 %v486, 1
    %vm492 = vcmp.gt.s32.totalorder %v491, 0
    %v493 = vsel %vm492, %v491, 0
    %v494 = vshrl.u32 %v493, 5
    %v495 = vand.u32 %v493, 31
    %v496 = vsub.s32 32, %v495
    %v497 = vshrl.u32 683565275, %v496
    %v498 = vshll.u32 683565275, %v495
    %v499 = vshrl.u32 2475754826, %v496
    %v500 = vor.u32 %v498, %v499
    %v501 = vshll.u32 2475754826, %v495
    %v502 = vshrl.u32 2131351028, %v496
    %v503 = vor.u32 %v501, %v502
    %v504 = vshll.u32 2131351028, %v495
    %v505 = vshrl.u32 2102212464, %v496
    %v506 = vor.u32 %v504, %v505
    %v507 = vshll.u32 2102212464, %v495
    %v508 = vshrl.u32 920167782, %v496
    %v509 = vor.u32 %v507, %v508
    %v510 = vshll.u32 920167782, %v495
    %v511 = vshrl.u32 1326507024, %v496
    %v512 = vor.u32 %v510, %v511
    %vm513 = vcmp.lt.s32.totalorder %v494, 1
    %vm514 = vcmp.lt.s32.totalorder %v494, 2
    %vm515 = vcmp.lt.s32.totalorder %v494, 3
    %vm516 = vcmp.lt.s32.totalorder %v494, 4
    %v517 = vsel %vm513, %v497, %v500
    %v518 = vsel %vm516, %v506, 2102212464
    %v519 = vsel %vm515, %v503, %v518
    %v520 = vsel %vm514, %v517, %v519
    %v521 = vsel %vm513, %v500, %v503
    %v522 = vsel %vm516, %v509, 920167782
    %v523 = vsel %vm515, %v506, %v522
    %v524 = vsel %vm514, %v521, %v523
    %v525 = vsel %vm513, %v503, %v506
    %v526 = vsel %vm516, %v512, 1326507024
    %v527 = vsel %vm515, %v509, %v526
    %v528 = vsel %vm514, %v525, %v527
    %v529 = vshll.u32 %v489, 8
    %v530 = vand.u32 %v529, 65535
    %v531 = vshrl.u32 %v529, 16
    %v532 = vand.u32 %v528, 65535
    %v533 = vshrl.u32 %v528, 16
    %v534 = vmul.u32 %v530, %v532
    %v535 = vmul.u32 %v530, %v533
    %v536 = vmul.u32 %v531, %v532
    %v537 = vmul.u32 %v531, %v533
    %v538 = vshll.u32 %v535, 16
    %v539 = vshrl.u32 %v535, 16
    %v540 = vshll.u32 %v536, 16
    %v541 = vshrl.u32 %v536, 16
    %vm542 = vc.u32 %v534, %v538
    %v543 = vsel %vm542, 1, 0
    %v544 = vadd.s32 %v534, %v538
    %v545 = vadd.s32 %v537, %v543
    %vm546 = vc.u32 %v544, %v540
    %v547 = vsel %vm546, 1, 0
    %v548 = vadd.s32 %v544, %v540
    %v549 = vadd.s32 %v545, %v547
    %v550 = vadd.s32 %v549, %v539
    %v551 = vadd.s32 %v550, %v541
    %v552 = vand.u32 %v529, 65535
    %v553 = vshrl.u32 %v529, 16
    %v554 = vand.u32 %v524, 65535
    %v555 = vshrl.u32 %v524, 16
    %v556 = vmul.u32 %v552, %v554
    %v557 = vmul.u32 %v552, %v555
    %v558 = vmul.u32 %v553, %v554
    %v559 = vmul.u32 %v553, %v555
    %v560 = vshll.u32 %v557, 16
    %v561 = vshrl.u32 %v557, 16
    %v562 = vshll.u32 %v558, 16
    %v563 = vshrl.u32 %v558, 16
    %vm564 = vc.u32 %v556, %v560
    %v565 = vsel %vm564, 1, 0
    %v566 = vadd.s32 %v556, %v560
    %v567 = vadd.s32 %v559, %v565
    %vm568 = vc.u32 %v566, %v562
    %v569 = vsel %vm568, 1, 0
    %v570 = vadd.s32 %v566, %v562
    %v571 = vadd.s32 %v567, %v569
    %v572 = vadd.s32 %v571, %v561
    %v573 = vadd.s32 %v572, %v563
    %v574 = vmul.u32 %v529, %v520
    %v575 = vadd.s32 %v551, %v570
    %vm576 = vc.u32 %v551, %v570
    %v577 = vadd.s32 %v573, 1
    %v578 = vsel %vm576, %v577, %v573
    %v579 = vadd.s32 %v574, %v578
    %v580 = vadd.s32 %v579, 536870912
    %v581 = vshrl.u32 %v580, 30
    %v582 = vshll.u32 %v581, 30
    %v583 = vsub.s32 %v579, %v582
    %vm584 = vcmp.lt.s32.totalorder %v583, 0
    %v585 = vsub.s32 0, %v583
    %v586 = vsel %vm584, %v585, %v583
    %v587 = vclz %v586
    %v588 = vsub.s32 %v587, 2
    %vm589 = vcmp.gt.s32.totalorder 0, %v588
    %v590 = vsel %vm589, 0, %v588
    %v591 = vsub.s32 32, %v590
    %v592 = vshll.u32 %v583, %v590
    %v593 = vshrl.u32 %v575, %v591
    %v594 = vor.u32 %v592, %v593
    %v595 = vsub.s32 4294967266, %v590
    %v596 = vadd.s32 %v595, 127
    %v597 = vshll.u32 %v596, 23
    %v598 = vor.u32 4788187, %v597
    %v599 = vand.u32 2147483647, %v598
    %v601 = vcvt.s32.f32 %v594
    %v602 = vmul.f32 %v601, %v599
    %v603 = vxor.u32 %v602, 2147483648
    %v604 = vsel %vm483, %v603, %v602
    %v605 = vsub.s32 4, %v581
    %v606 = vsel %vm483, %v605, %v581
    %v607 = vsel %vm482, %v183, %v604
    %v608 = vsel %vm482, 0, %v606
    %v609 = vmul.f32 %v607, %v607
    %v610 = vmul.f32 %v609, -0.001358992
    %v611 = vadd.f32 %v610, 0.041655596
    %v612 = vmul.f32 %v609, %v611
    %v613 = vadd.f32 %v612, -0.4999988
    %v614 = vmul.f32 %v609, %v613
    %v615 = vadd.f32 1.0, %v614
    %v616 = vmul.f32 %v607, %v607
    %v617 = vmul.f32 %v616, -0.00019511016
    %v618 = vadd.f32 %v617, 0.008332121
    %v619 = vmul.f32 %v616, %v618
    %v620 = vadd.f32 %v619, -0.16666654
    %v621 = vmul.f32 %v616, %v620
    %v622 = vadd.f32 %v621, 1.0
    %v623 = vmul.f32 %v622, %v607
    %vm624 = vweird.f32 %v183
    %v625 = vadd.s32 %v608, 3
    %v626 = vand.u32 %v625, 3
    %vm627 = vcmp.lt.s32.totalorder %v626, 2
    %vm628 = vcmp.eq.s32.totalorder %v626, 0
    %v629 = vxor.u32 %v623, 2147483648
    %v630 = vsel %vm628, %v615, %v629
    %vm631 = vcmp.eq.s32.totalorder %v626, 2
    %v632 = vxor.u32 %v615, 2147483648
    %v633 = vsel %vm631, %v632, %v623
    %v634 = vsel %vm627, %v630, %v633
    %v635 = vsel %vm624, nan, %v634
    %v636 = vand.u32 2147483647, %v206
    %vm637 = vcmp.le.f32.partialorder %v636, 0.7853982
    %vm638 = vcmp.lt.s32.totalorder %v206, 0
    %v639 = vand.u32 %v206, 2139095040
    %v640 = vshrl.u32 %v639, 23
    %v641 = vsub.s32 %v640, 127
    %v642 = vand.u32 2147483647, %v206
    %v643 = vand.u32 %v642, 8388607
    %v644 = vor.u32 %v643, 8388608
    %v645 = vsub.s32 0, %v644
    %v646 = vadd.s32 %v641, 1
    %vm647 = vcmp.gt.s32.totalorder %v646, 0
    %v648 = vsel %vm647, %v646, 0
    %v649 = vshrl.u32 %v648, 5
    %v650 = vand.u32 %v648, 31
    %v651 = vsub.s32 32, %v650
    %v652 = vshrl.u32 683565275, %v651
    %v653 = vshll.u32 683565275, %v650
    %v654 = vshrl.u32 2475754826, %v651
    %v655 = vor.u32 %v653, %v654
    %v656 = vshll.u32 2475754826, %v650
    %v657 = vshrl.u32 2131351028, %v651
    %v658 = vor.u32 %v656, %v657
    %v659 = vshll.u32 2131351028, %v650
    %v660 = vshrl.u32 2102212464, %v651
    %v661 = vor.u32 %v659, %v660
    %v662 = vshll.u32 2102212464, %v650
    %v663 = vshrl.u32 920167782, %v651
    %v664 = vor.u32 %v662, %v663
    %v665 = vshll.u32 920167782, %v650
    %v666 = vshrl.u32 1326507024, %v651
    %v667 = vor.u32 %v665, %v666
    %vm668 = vcmp.lt.s32.totalorder %v649, 1
    %vm669 = vcmp.lt.s32.totalorder %v649, 2
    %vm670 = vcmp.lt.s32.totalorder %v649, 3
    %vm671 = vcmp.lt.s32.totalorder %v649, 4
    %v672 = vsel %vm668, %v652, %v655
    %v673 = vsel %vm671, %v661, 2102212464
    %v674 = vsel %vm670, %v658, %v673
    %v675 = vsel %vm669, %v672, %v674
    %v676 = vsel %vm668, %v655, %v658
    %v677 = vsel %vm671, %v664, 920167782
    %v678 = vsel %vm670, %v661, %v677
    %v679 = vsel %vm669, %v676, %v678
    %v680 = vsel %vm668, %v658, %v661
    %v681 = vsel %vm671, %v667, 1326507024
    %v682 = vsel %vm670, %v664, %v681
    %v683 = vsel %vm669, %v680, %v682
    %v684 = vshll.u32 %v644, 8
    %v685 = vand.u32 %v684, 65535
    %v686 = vshrl.u32 %v684, 16
    %v687 = vand.u32 %v683, 65535
    %v688 = vshrl.u32 %v683, 16
    %v689 = vmul.u32 %v685, %v687
    %v690 = vmul.u32 %v685, %v688
    %v691 = vmul.u32 %v686, %v687
    %v692 = vmul.u32 %v686, %v688
    %v693 = vshll.u32 %v690, 16
    %v694 = vshrl.u32 %v690, 16
    %v695 = vshll.u32 %v691, 16
    %v696 = vshrl.u32 %v691, 16
    %vm697 = vc.u32 %v689, %v693
    %v698 = vsel %vm697, 1, 0
    %v699 = vadd.s32 %v689, %v693
    %v700 = vadd.s32 %v692, %v698
    %vm701 = vc.u32 %v699, %v695
    %v702 = vsel %vm701, 1, 0
    %v703 = vadd.s32 %v699, %v695
    %v704 = vadd.s32 %v700, %v702
    %v705 = vadd.s32 %v704, %v694
    %v706 = vadd.s32 %v705, %v696
    %v707 = vand.u32 %v684, 65535
    %v708 = vshrl.u32 %v684, 16
    %v709 = vand.u32 %v679, 65535
    %v710 = vshrl.u32 %v679, 16
    %v711 = vmul.u32 %v707, %v709
    %v712 = vmul.u32 %v707, %v710
    %v713 = vmul.u32 %v708, %v709
    %v714 = vmul.u32 %v708, %v710
    %v715 = vshll.u32 %v712, 16
    %v716 = vshrl.u32 %v712, 16
    %v717 = vshll.u32 %v713, 16
    %v718 = vshrl.u32 %v713, 16
    %vm719 = vc.u32 %v711, %v715
    %v720 = vsel %vm719, 1, 0
    %v721 = vadd.s32 %v711, %v715
    %v722 = vadd.s32 %v714, %v720
    %vm723 = vc.u32 %v721, %v717
    %v724 = vsel %vm723, 1, 0
    %v725 = vadd.s32 %v721, %v717
    %v726 = vadd.s32 %v722, %v724
    %v727 = vadd.s32 %v726, %v716
    %v728 = vadd.s32 %v727, %v718
    %v729 = vmul.u32 %v684, %v675
    %v730 = vadd.s32 %v706, %v725
    %vm731 = vc.u32 %v706, %v725
    %v732 = vadd.s32 %v728, 1
    %v733 = vsel %vm731, %v732, %v728
    %v734 = vadd.s32 %v729, %v733
    %v735 = vadd.s32 %v734, 536870912
    %v736 = vshrl.u32 %v735, 30
    %v737 = vshll.u32 %v736, 30
    %v738 = vsub.s32 %v734, %v737
    %vm739 = vcmp.lt.s32.totalorder %v738, 0
    %v740 = vsub.s32 0, %v738
    %v741 = vsel %vm739, %v740, %v738
    %v742 = vclz %v741
    %v743 = vsub.s32 %v742, 2
    %vm744 = vcmp.gt.s32.totalorder 0, %v743
    %v745 = vsel %vm744, 0, %v743
    %v746 = vsub.s32 32, %v745
    %v747 = vshll.u32 %v738, %v745
    %v748 = vshrl.u32 %v730, %v746
    %v749 = vor.u32 %v747, %v748
    %v750 = vsub.s32 4294967266, %v745
    %v751 = vadd.s32 %v750, 127
    %v752 = vshll.u32 %v751, 23
    %v753 = vor.u32 4788187, %v752
    %v754 = vand.u32 2147483647, %v753
    %v756 = vcvt.s32.f32 %v749
    %v757 = vmul.f32 %v756, %v754
    %v758 = vxor.u32 %v757, 2147483648
    %v759 = vsel %vm638, %v758, %v757
    %v760 = vsub.s32 4, %v736
    %v761 = vsel %vm638, %v760, %v736
    %v762 = vsel %vm637, %v206, %v759
    %v763 = vsel %vm637, 0, %v761
    %v764 = vmul.f32 %v762, %v762
    %v765 = vmul.f32 %v764, -0.001358992
    %v766 = vadd.f32 %v765, 0.041655596
    %v767 = vmul.f32 %v764, %v766
    %v768 = vadd.f32 %v767, -0.4999988
    %v769 = vmul.f32 %v764, %v768
    %v770 = vadd.f32 1.0, %v769
    %v771 = vmul.f32 %v762, %v762
    %v772 = vmul.f32 %v771, -0.00019511016
    %v773 = vadd.f32 %v772, 0.008332121
    %v774 = vmul.f32 %v771, %v773
    %v775 = vadd.f32 %v774, -0.16666654
    %v776 = vmul.f32 %v771, %v775
    %v777 = vadd.f32 %v776, 1.0
    %v778 = vmul.f32 %v777, %v762
    %vm779 = vweird.f32 %v206
    %v780 = vadd.s32 %v763, 3
    %v781 = vand.u32 %v780, 3
    %vm782 = vcmp.lt.s32.totalorder %v781, 2
    %vm783 = vcmp.eq.s32.totalorder %v781, 0
    %v784 = vxor.u32 %v778, 2147483648
    %v785 = vsel %vm783, %v770, %v784
    %vm786 = vcmp.eq.s32.totalorder %v781, 2
    %v787 = vxor.u32 %v770, 2147483648
    %v788 = vsel %vm786, %v787, %v778
    %v789 = vsel %vm782, %v785, %v788
    %v790 = vsel %vm779, nan, %v789
    %v791 = vand.u32 2147483647, %v229
    %vm792 = vcmp.le.f32.partialorder %v791, 0.7853982
    %vm793 = vcmp.lt.s32.totalorder %v229, 0
    %v794 = vand.u32 %v229, 2139095040
    %v795 = vshrl.u32 %v794, 23
    %v796 = vsub.s32 %v795, 127
    %v797 = vand.u32 2147483647, %v229
    %v798 = vand.u32 %v797, 8388607
    %v799 = vor.u32 %v798, 8388608
    %v800 = vsub.s32 0, %v799
    %v801 = vadd.s32 %v796, 1
    %vm802 = vcmp.gt.s32.totalorder %v801, 0
    %v803 = vsel %vm802, %v801, 0
    %v804 = vshrl.u32 %v803, 5
    %v805 = vand.u32 %v803, 31
    %v806 = vsub.s32 32, %v805
    %v807 = vshrl.u32 683565275, %v806
    %v808 = vshll.u32 683565275, %v805
    %v809 = vshrl.u32 2475754826, %v806
    %v810 = vor.u32 %v808, %v809
    %v811 = vshll.u32 2475754826, %v805
    %v812 = vshrl.u32 2131351028, %v806
    %v813 = vor.u32 %v811, %v812
    %v814 = vshll.u32 2131351028, %v805
    %v815 = vshrl.u32 2102212464, %v806
    %v816 = vor.u32 %v814, %v815
    %v817 = vshll.u32 2102212464, %v805
    %v818 = vshrl.u32 920167782, %v806
    %v819 = vor.u32 %v817, %v818
    %v820 = vshll.u32 920167782, %v805
    %v821 = vshrl.u32 1326507024, %v806
    %v822 = vor.u32 %v820, %v821
    %vm823 = vcmp.lt.s32.totalorder %v804, 1
    %vm824 = vcmp.lt.s32.totalorder %v804, 2
    %vm825 = vcmp.lt.s32.totalorder %v804, 3
    %vm826 = vcmp.lt.s32.totalorder %v804, 4
    %v827 = vsel %vm823, %v807, %v810
    %v828 = vsel %vm826, %v816, 2102212464
    %v829 = vsel %vm825, %v813, %v828
    %v830 = vsel %vm824, %v827, %v829
    %v831 = vsel %vm823, %v810, %v813
    %v832 = vsel %vm826, %v819, 920167782
    %v833 = vsel %vm825, %v816, %v832
    %v834 = vsel %vm824, %v831, %v833
    %v835 = vsel %vm823, %v813, %v816
    %v836 = vsel %vm826, %v822, 1326507024
    %v837 = vsel %vm825, %v819, %v836
    %v838 = vsel %vm824, %v835, %v837
    %v839 = vshll.u32 %v799, 8
    %v840 = vand.u32 %v839, 65535
    %v841 = vshrl.u32 %v839, 16
    %v842 = vand.u32 %v838, 65535
    %v843 = vshrl.u32 %v838, 16
    %v844 = vmul.u32 %v840, %v842
    %v845 = vmul.u32 %v840, %v843
    %v846 = vmul.u32 %v841, %v842
    %v847 = vmul.u32 %v841, %v843
    %v848 = vshll.u32 %v845, 16
    %v849 = vshrl.u32 %v845, 16
    %v850 = vshll.u32 %v846, 16
    %v851 = vshrl.u32 %v846, 16
    %vm852 = vc.u32 %v844, %v848
    %v853 = vsel %vm852, 1, 0
    %v854 = vadd.s32 %v844, %v848
    %v855 = vadd.s32 %v847, %v853
    %vm856 = vc.u32 %v854, %v850
    %v857 = vsel %vm856, 1, 0
    %v858 = vadd.s32 %v854, %v850
    %v859 = vadd.s32 %v855, %v857
    %v860 = vadd.s32 %v859, %v849
    %v861 = vadd.s32 %v860, %v851
    %v862 = vand.u32 %v839, 65535
    %v863 = vshrl.u32 %v839, 16
    %v864 = vand.u32 %v834, 65535
    %v865 = vshrl.u32 %v834, 16
    %v866 = vmul.u32 %v862, %v864
    %v867 = vmul.u32 %v862, %v865
    %v868 = vmul.u32 %v863, %v864
    %v869 = vmul.u32 %v863, %v865
    %v870 = vshll.u32 %v867, 16
    %v871 = vshrl.u32 %v867, 16
    %v872 = vshll.u32 %v868, 16
    %v873 = vshrl.u32 %v868, 16
    %vm874 = vc.u32 %v866, %v870
    %v875 = vsel %vm874, 1, 0
    %v876 = vadd.s32 %v866, %v870
    %v877 = vadd.s32 %v869, %v875
    %vm878 = vc.u32 %v876, %v872
    %v879 = vsel %vm878, 1, 0
    %v880 = vadd.s32 %v876, %v872
    %v881 = vadd.s32 %v877, %v879
    %v882 = vadd.s32 %v881, %v871
    %v883 = vadd.s32 %v882, %v873
    %v884 = vmul.u32 %v839, %v830
    %v885 = vadd.s32 %v861, %v880
    %vm886 = vc.u32 %v861, %v880
    %v887 = vadd.s32 %v883, 1
    %v888 = vsel %vm886, %v887, %v883
    %v889 = vadd.s32 %v884, %v888
    %v890 = vadd.s32 %v889, 536870912
    %v891 = vshrl.u32 %v890, 30
    %v892 = vshll.u32 %v891, 30
    %v893 = vsub.s32 %v889, %v892
    %vm894 = vcmp.lt.s32.totalorder %v893, 0
    %v895 = vsub.s32 0, %v893
    %v896 = vsel %vm894, %v895, %v893
    %v897 = vclz %v896
    %v898 = vsub.s32 %v897, 2
    %vm899 = vcmp.gt.s32.totalorder 0, %v898
    %v900 = vsel %vm899, 0, %v898
    %v901 = vsub.s32 32, %v900
    %v902 = vshll.u32 %v893, %v900
    %v903 = vshrl.u32 %v885, %v901
    %v904 = vor.u32 %v902, %v903
    %v905 = vsub.s32 4294967266, %v900
    %v906 = vadd.s32 %v905, 127
    %v907 = vshll.u32 %v906, 23
    %v908 = vor.u32 4788187, %v907
    %v909 = vand.u32 2147483647, %v908
    %v911 = vcvt.s32.f32 %v904
    %v912 = vmul.f32 %v911, %v909
    %v913 = vxor.u32 %v912, 2147483648
    %v914 = vsel %vm793, %v913, %v912
    %v915 = vsub.s32 4, %v891
    %v916 = vsel %vm793, %v915, %v891
    %v917 = vsel %vm792, %v229, %v914
    %v918 = vsel %vm792, 0, %v916
    %v919 = vmul.f32 %v917, %v917
    %v920 = vmul.f32 %v919, -0.001358992
    %v921 = vadd.f32 %v920, 0.041655596
    %v922 = vmul.f32 %v919, %v921
    %v923 = vadd.f32 %v922, -0.4999988
    %v924 = vmul.f32 %v919, %v923
    %v925 = vadd.f32 1.0, %v924
    %v926 = vmul.f32 %v917, %v917
    %v927 = vmul.f32 %v926, -0.00019511016
    %v928 = vadd.f32 %v927, 0.008332121
    %v929 = vmul.f32 %v926, %v928
    %v930 = vadd.f32 %v929, -0.16666654
    %v931 = vmul.f32 %v926, %v930
    %v932 = vadd.f32 %v931, 1.0
    %v933 = vmul.f32 %v932, %v917
    %vm934 = vweird.f32 %v229
    %v935 = vadd.s32 %v918, 3
    %v936 = vand.u32 %v935, 3
    %vm937 = vcmp.lt.s32.totalorder %v936, 2
    %vm938 = vcmp.eq.s32.totalorder %v936, 0
    %v939 = vxor.u32 %v933, 2147483648
    %v940 = vsel %vm938, %v925, %v939
    %vm941 = vcmp.eq.s32.totalorder %v936, 2
    %v942 = vxor.u32 %v925, 2147483648
    %v943 = vsel %vm941, %v942, %v933
    %v944 = vsel %vm937, %v940, %v943
    %v945 = vsel %vm934, nan, %v944
    %v946 = vand.u32 2147483647, %v252
    %vm947 = vcmp.le.f32.partialorder %v946, 0.7853982
    %vm948 = vcmp.lt.s32.totalorder %v252, 0
    %v949 = vand.u32 %v252, 2139095040
    %v950 = vshrl.u32 %v949, 23
    %v951 = vsub.s32 %v950, 127
    %v952 = vand.u32 2147483647, %v252
    %v953 = vand.u32 %v952, 8388607
    %v954 = vor.u32 %v953, 8388608
    %v955 = vsub.s32 0, %v954
    %v956 = vadd.s32 %v951, 1
    %vm957 = vcmp.gt.s32.totalorder %v956, 0
    %v958 = vsel %vm957, %v956, 0
    %v959 = vshrl.u32 %v958, 5
    %v960 = vand.u32 %v958, 31
    %v961 = vsub.s32 32, %v960
    %v962 = vshrl.u32 683565275, %v961
    %v963 = vshll.u32 683565275, %v960
    %v964 = vshrl.u32 2475754826, %v961
    %v965 = vor.u32 %v963, %v964
    %v966 = vshll.u32 2475754826, %v960
    %v967 = vshrl.u32 2131351028, %v961
    %v968 = vor.u32 %v966, %v967
    %v969 = vshll.u32 2131351028, %v960
    %v970 = vshrl.u32 2102212464, %v961
    %v971 = vor.u32 %v969, %v970
    %v972 = vshll.u32 2102212464, %v960
    %v973 = vshrl.u32 920167782, %v961
    %v974 = vor.u32 %v972, %v973
    %v975 = vshll.u32 920167782, %v960
    %v976 = vshrl.u32 1326507024, %v961
    %v977 = vor.u32 %v975, %v976
    %vm978 = vcmp.lt.s32.totalorder %v959, 1
    %vm979 = vcmp.lt.s32.totalorder %v959, 2
    %vm980 = vcmp.lt.s32.totalorder %v959, 3
    %vm981 = vcmp.lt.s32.totalorder %v959, 4
    %v982 = vsel %vm978, %v962, %v965
    %v983 = vsel %vm981, %v971, 2102212464
    %v984 = vsel %vm980, %v968, %v983
    %v985 = vsel %vm979, %v982, %v984
    %v986 = vsel %vm978, %v965, %v968
    %v987 = vsel %vm981, %v974, 920167782
    %v988 = vsel %vm980, %v971, %v987
    %v989 = vsel %vm979, %v986, %v988
    %v990 = vsel %vm978, %v968, %v971
    %v991 = vsel %vm981, %v977, 1326507024
    %v992 = vsel %vm980, %v974, %v991
    %v993 = vsel %vm979, %v990, %v992
    %v994 = vshll.u32 %v954, 8
    %v995 = vand.u32 %v994, 65535
    %v996 = vshrl.u32 %v994, 16
    %v997 = vand.u32 %v993, 65535
    %v998 = vshrl.u32 %v993, 16
    %v999 = vmul.u32 %v995, %v997
    %v1000 = vmul.u32 %v995, %v998
    %v1001 = vmul.u32 %v996, %v997
    %v1002 = vmul.u32 %v996, %v998
    %v1003 = vshll.u32 %v1000, 16
    %v1004 = vshrl.u32 %v1000, 16
    %v1005 = vshll.u32 %v1001, 16
    %v1006 = vshrl.u32 %v1001, 16
    %vm1007 = vc.u32 %v999, %v1003
    %v1008 = vsel %vm1007, 1, 0
    %v1009 = vadd.s32 %v999, %v1003
    %v1010 = vadd.s32 %v1002, %v1008
    %vm1011 = vc.u32 %v1009, %v1005
    %v1012 = vsel %vm1011, 1, 0
    %v1013 = vadd.s32 %v1009, %v1005
    %v1014 = vadd.s32 %v1010, %v1012
    %v1015 = vadd.s32 %v1014, %v1004
    %v1016 = vadd.s32 %v1015, %v1006
    %v1017 = vand.u32 %v994, 65535
    %v1018 = vshrl.u32 %v994, 16
    %v1019 = vand.u32 %v989, 65535
    %v1020 = vshrl.u32 %v989, 16
    %v1021 = vmul.u32 %v1017, %v1019
    %v1022 = vmul.u32 %v1017, %v1020
    %v1023 = vmul.u32 %v1018, %v1019
    %v1024 = vmul.u32 %v1018, %v1020
    %v1025 = vshll.u32 %v1022, 16
    %v1026 = vshrl.u32 %v1022, 16
    %v1027 = vshll.u32 %v1023, 16
    %v1028 = vshrl.u32 %v1023, 16
    %vm1029 = vc.u32 %v1021, %v1025
    %v1030 = vsel %vm1029, 1, 0
    %v1031 = vadd.s32 %v1021, %v1025
    %v1032 = vadd.s32 %v1024, %v1030
    %vm1033 = vc.u32 %v1031, %v1027
    %v1034 = vsel %vm1033, 1, 0
    %v1035 = vadd.s32 %v1031, %v1027
    %v1036 = vadd.s32 %v1032, %v1034
    %v1037 = vadd.s32 %v1036, %v1026
    %v1038 = vadd.s32 %v1037, %v1028
    %v1039 = vmul.u32 %v994, %v985
    %v1040 = vadd.s32 %v1016, %v1035
    %vm1041 = vc.u32 %v1016, %v1035
    %v1042 = vadd.s32 %v1038, 1
    %v1043 = vsel %vm1041, %v1042, %v1038
    %v1044 = vadd.s32 %v1039, %v1043
    %v1045 = vadd.s32 %v1044, 536870912
    %v1046 = vshrl.u32 %v1045, 30
    %v1047 = vshll.u32 %v1046, 30
    %v1048 = vsub.s32 %v1044, %v1047
    %vm1049 = vcmp.lt.s32.totalorder %v1048, 0
    %v1050 = vsub.s32 0, %v1048
    %v1051 = vsel %vm1049, %v1050, %v1048
    %v1052 = vclz %v1051
    %v1053 = vsub.s32 %v1052, 2
    %vm1054 = vcmp.gt.s32.totalorder 0, %v1053
    %v1055 = vsel %vm1054, 0, %v1053
    %v1056 = vsub.s32 32, %v1055
    %v1057 = vshll.u32 %v1048, %v1055
    %v1058 = vshrl.u32 %v1040, %v1056
    %v1059 = vor.u32 %v1057, %v1058
    %v1060 = vsub.s32 4294967266, %v1055
    %v1061 = vadd.s32 %v1060, 127
    %v1062 = vshll.u32 %v1061, 23
    %v1063 = vor.u32 4788187, %v1062
    %v1064 = vand.u32 2147483647, %v1063
    %v1066 = vcvt.s32.f32 %v1059
    %v1067 = vmul.f32 %v1066, %v1064
    %v1068 = vxor.u32 %v1067, 2147483648
    %v1069 = vsel %vm948, %v1068, %v1067
    %v1070 = vsub.s32 4, %v1046
    %v1071 = vsel %vm948, %v1070, %v1046
    %v1072 = vsel %vm947, %v252, %v1069
    %v1073 = vsel %vm947, 0, %v1071
    %v1074 = vmul.f32 %v1072, %v1072
    %v1075 = vmul.f32 %v1074, -0.001358992
    %v1076 = vadd.f32 %v1075, 0.041655596
    %v1077 = vmul.f32 %v1074, %v1076
    %v1078 = vadd.f32 %v1077, -0.4999988
    %v1079 = vmul.f32 %v1074, %v1078
    %v1080 = vadd.f32 1.0, %v1079
    %v1081 = vmul.f32 %v1072, %v1072
    %v1082 = vmul.f32 %v1081, -0.00019511016
    %v1083 = vadd.f32 %v1082, 0.008332121
    %v1084 = vmul.f32 %v1081, %v1083
    %v1085 = vadd.f32 %v1084, -0.16666654
    %v1086 = vmul.f32 %v1081, %v1085
    %v1087 = vadd.f32 %v1086, 1.0
    %v1088 = vmul.f32 %v1087, %v1072
    %vm1089 = vweird.f32 %v252
    %v1090 = vadd.s32 %v1073, 3
    %v1091 = vand.u32 %v1090, 3
    %vm1092 = vcmp.lt.s32.totalorder %v1091, 2
    %vm1093 = vcmp.eq.s32.totalorder %v1091, 0
    %v1094 = vxor.u32 %v1088, 2147483648
    %v1095 = vsel %vm1093, %v1080, %v1094
    %vm1096 = vcmp.eq.s32.totalorder %v1091, 2
    %v1097 = vxor.u32 %v1080, 2147483648
    %v1098 = vsel %vm1096, %v1097, %v1088
    %v1099 = vsel %vm1092, %v1095, %v1098
    %v1100 = vsel %vm1089, nan, %v1099
    %v1101 = vand.u32 2147483647, %v275
    %vm1102 = vcmp.le.f32.partialorder %v1101, 0.7853982
    %vm1103 = vcmp.lt.s32.totalorder %v275, 0
    %v1104 = vand.u32 %v275, 2139095040
    %v1105 = vshrl.u32 %v1104, 23
    %v1106 = vsub.s32 %v1105, 127
    %v1107 = vand.u32 2147483647, %v275
    %v1108 = vand.u32 %v1107, 8388607
    %v1109 = vor.u32 %v1108, 8388608
    %v1110 = vsub.s32 0, %v1109
    %v1111 = vadd.s32 %v1106, 1
    %vm1112 = vcmp.gt.s32.totalorder %v1111, 0
    %v1113 = vsel %vm1112, %v1111, 0
    %v1114 = vshrl.u32 %v1113, 5
    %v1115 = vand.u32 %v1113, 31
    %v1116 = vsub.s32 32, %v1115
    %v1117 = vshrl.u32 683565275, %v1116
    %v1118 = vshll.u32 683565275, %v1115
    %v1119 = vshrl.u32 2475754826, %v1116
    %v1120 = vor.u32 %v1118, %v1119
    %v1121 = vshll.u32 2475754826, %v1115
    %v1122 = vshrl.u32 2131351028, %v1116
    %v1123 = vor.u32 %v1121, %v1122
    %v1124 = vshll.u32 2131351028, %v1115
    %v1125 = vshrl.u32 2102212464, %v1116
    %v1126 = vor.u32 %v1124, %v1125
    %v1127 = vshll.u32 2102212464, %v1115
    %v1128 = vshrl.u32 920167782, %v1116
    %v1129 = vor.u32 %v1127, %v1128
    %v1130 = vshll.u32 920167782, %v1115
    %v1131 = vshrl.u32 1326507024, %v1116
    %v1132 = vor.u32 %v1130, %v1131
    %vm1133 = vcmp.lt.s32.totalorder %v1114, 1
    %vm1134 = vcmp.lt.s32.totalorder %v1114, 2
    %vm1135 = vcmp.lt.s32.totalorder %v1114, 3
    %vm1136 = vcmp.lt.s32.totalorder %v1114, 4
    %v1137 = vsel %vm1133, %v1117, %v1120
    %v1138 = vsel %vm1136, %v1126, 2102212464
    %v1139 = vsel %vm1135, %v1123, %v1138
    %v1140 = vsel %vm1134, %v1137, %v1139
    %v1141 = vsel %vm1133, %v1120, %v1123
    %v1142 = vsel %vm1136, %v1129, 920167782
    %v1143 = vsel %vm1135, %v1126, %v1142
    %v1144 = vsel %vm1134, %v1141, %v1143
    %v1145 = vsel %vm1133, %v1123, %v1126
    %v1146 = vsel %vm1136, %v1132, 1326507024
    %v1147 = vsel %vm1135, %v1129, %v1146
    %v1148 = vsel %vm1134, %v1145, %v1147
    %v1149 = vshll.u32 %v1109, 8
    %v1150 = vand.u32 %v1149, 65535
    %v1151 = vshrl.u32 %v1149, 16
    %v1152 = vand.u32 %v1148, 65535
    %v1153 = vshrl.u32 %v1148, 16
    %v1154 = vmul.u32 %v1150, %v1152
    %v1155 = vmul.u32 %v1150, %v1153
    %v1156 = vmul.u32 %v1151, %v1152
    %v1157 = vmul.u32 %v1151, %v1153
    %v1158 = vshll.u32 %v1155, 16
    %v1159 = vshrl.u32 %v1155, 16
    %v1160 = vshll.u32 %v1156, 16
    %v1161 = vshrl.u32 %v1156, 16
    %vm1162 = vc.u32 %v1154, %v1158
    %v1163 = vsel %vm1162, 1, 0
    %v1164 = vadd.s32 %v1154, %v1158
    %v1165 = vadd.s32 %v1157, %v1163
    %vm1166 = vc.u32 %v1164, %v1160
    %v1167 = vsel %vm1166, 1, 0
    %v1168 = vadd.s32 %v1164, %v1160
    %v1169 = vadd.s32 %v1165, %v1167
    %v1170 = vadd.s32 %v1169, %v1159
    %v1171 = vadd.s32 %v1170, %v1161
    %v1172 = vand.u32 %v1149, 65535
    %v1173 = vshrl.u32 %v1149, 16
    %v1174 = vand.u32 %v1144, 65535
    %v1175 = vshrl.u32 %v1144, 16
    %v1176 = vmul.u32 %v1172, %v1174
    %v1177 = vmul.u32 %v1172, %v1175
    %v1178 = vmul.u32 %v1173, %v1174
    %v1179 = vmul.u32 %v1173, %v1175
    %v1180 = vshll.u32 %v1177, 16
    %v1181 = vshrl.u32 %v1177, 16
    %v1182 = vshll.u32 %v1178, 16
    %v1183 = vshrl.u32 %v1178, 16
    %vm1184 = vc.u32 %v1176, %v1180
    %v1185 = vsel %vm1184, 1, 0
    %v1186 = vadd.s32 %v1176, %v1180
    %v1187 = vadd.s32 %v1179, %v1185
    %vm1188 = vc.u32 %v1186, %v1182
    %v1189 = vsel %vm1188, 1, 0
    %v1190 = vadd.s32 %v1186, %v1182
    %v1191 = vadd.s32 %v1187, %v1189
    %v1192 = vadd.s32 %v1191, %v1181
    %v1193 = vadd.s32 %v1192, %v1183
    %v1194 = vmul.u32 %v1149, %v1140
    %v1195 = vadd.s32 %v1171, %v1190
    %vm1196 = vc.u32 %v1171, %v1190
    %v1197 = vadd.s32 %v1193, 1
    %v1198 = vsel %vm1196, %v1197, %v1193
    %v1199 = vadd.s32 %v1194, %v1198
    %v1200 = vadd.s32 %v1199, 536870912
    %v1201 = vshrl.u32 %v1200, 30
    %v1202 = vshll.u32 %v1201, 30
    %v1203 = vsub.s32 %v1199, %v1202
    %vm1204 = vcmp.lt.s32.totalorder %v1203, 0
    %v1205 = vsub.s32 0, %v1203
    %v1206 = vsel %vm1204, %v1205, %v1203
    %v1207 = vclz %v1206
    %v1208 = vsub.s32 %v1207, 2
    %vm1209 = vcmp.gt.s32.totalorder 0, %v1208
    %v1210 = vsel %vm1209, 0, %v1208
    %v1211 = vsub.s32 32, %v1210
    %v1212 = vshll.u32 %v1203, %v1210
    %v1213 = vshrl.u32 %v1195, %v1211
    %v1214 = vor.u32 %v1212, %v1213
    %v1215 = vsub.s32 4294967266, %v1210
    %v1216 = vadd.s32 %v1215, 127
    %v1217 = vshll.u32 %v1216, 23
    %v1218 = vor.u32 4788187, %v1217
    %v1219 = vand.u32 2147483647, %v1218
    %v1221 = vcvt.s32.f32 %v1214
    %v1222 = vmul.f32 %v1221, %v1219
    %v1223 = vxor.u32 %v1222, 2147483648
    %v1224 = vsel %vm1103, %v1223, %v1222
    %v1225 = vsub.s32 4, %v1201
    %v1226 = vsel %vm1103, %v1225, %v1201
    %v1227 = vsel %vm1102, %v275, %v1224
    %v1228 = vsel %vm1102, 0, %v1226
    %v1229 = vmul.f32 %v1227, %v1227
    %v1230 = vmul.f32 %v1229, -0.001358992
    %v1231 = vadd.f32 %v1230, 0.041655596
    %v1232 = vmul.f32 %v1229, %v1231
    %v1233 = vadd.f32 %v1232, -0.4999988
    %v1234 = vmul.f32 %v1229, %v1233
    %v1235 = vadd.f32 1.0, %v1234
    %v1236 = vmul.f32 %v1227, %v1227
    %v1237 = vmul.f32 %v1236, -0.00019511016
    %v1238 = vadd.f32 %v1237, 0.008332121
    %v1239 = vmul.f32 %v1236, %v1238
    %v1240 = vadd.f32 %v1239, -0.16666654
    %v1241 = vmul.f32 %v1236, %v1240
    %v1242 = vadd.f32 %v1241, 1.0
    %v1243 = vmul.f32 %v1242, %v1227
    %vm1244 = vweird.f32 %v275
    %v1245 = vadd.s32 %v1228, 3
    %v1246 = vand.u32 %v1245, 3
    %vm1247 = vcmp.lt.s32.totalorder %v1246, 2
    %vm1248 = vcmp.eq.s32.totalorder %v1246, 0
    %v1249 = vxor.u32 %v1243, 2147483648
    %v1250 = vsel %vm1248, %v1235, %v1249
    %vm1251 = vcmp.eq.s32.totalorder %v1246, 2
    %v1252 = vxor.u32 %v1235, 2147483648
    %v1253 = vsel %vm1251, %v1252, %v1243
    %v1254 = vsel %vm1247, %v1250, %v1253
    %v1255 = vsel %vm1244, nan, %v1254
    %v1256 = vand.u32 2147483647, %v298
    %vm1257 = vcmp.le.f32.partialorder %v1256, 0.7853982
    %vm1258 = vcmp.lt.s32.totalorder %v298, 0
    %v1259 = vand.u32 %v298, 2139095040
    %v1260 = vshrl.u32 %v1259, 23
    %v1261 = vsub.s32 %v1260, 127
    %v1262 = vand.u32 2147483647, %v298
    %v1263 = vand.u32 %v1262, 8388607
    %v1264 = vor.u32 %v1263, 8388608
    %v1265 = vsub.s32 0, %v1264
    %v1266 = vadd.s32 %v1261, 1
    %vm1267 = vcmp.gt.s32.totalorder %v1266, 0
    %v1268 = vsel %vm1267, %v1266, 0
    %v1269 = vshrl.u32 %v1268, 5
    %v1270 = vand.u32 %v1268, 31
    %v1271 = vsub.s32 32, %v1270
    %v1272 = vshrl.u32 683565275, %v1271
    %v1273 = vshll.u32 683565275, %v1270
    %v1274 = vshrl.u32 2475754826, %v1271
    %v1275 = vor.u32 %v1273, %v1274
    %v1276 = vshll.u32 2475754826, %v1270
    %v1277 = vshrl.u32 2131351028, %v1271
    %v1278 = vor.u32 %v1276, %v1277
    %v1279 = vshll.u32 2131351028, %v1270
    %v1280 = vshrl.u32 2102212464, %v1271
    %v1281 = vor.u32 %v1279, %v1280
    %v1282 = vshll.u32 2102212464, %v1270
    %v1283 = vshrl.u32 920167782, %v1271
    %v1284 = vor.u32 %v1282, %v1283
    %v1285 = vshll.u32 920167782, %v1270
    %v1286 = vshrl.u32 1326507024, %v1271
    %v1287 = vor.u32 %v1285, %v1286
    %vm1288 = vcmp.lt.s32.totalorder %v1269, 1
    %vm1289 = vcmp.lt.s32.totalorder %v1269, 2
    %vm1290 = vcmp.lt.s32.totalorder %v1269, 3
    %vm1291 = vcmp.lt.s32.totalorder %v1269, 4
    %v1292 = vsel %vm1288, %v1272, %v1275
    %v1293 = vsel %vm1291, %v1281, 2102212464
    %v1294 = vsel %vm1290, %v1278, %v1293
    %v1295 = vsel %vm1289, %v1292, %v1294
    %v1296 = vsel %vm1288, %v1275, %v1278
    %v1297 = vsel %vm1291, %v1284, 920167782
    %v1298 = vsel %vm1290, %v1281, %v1297
    %v1299 = vsel %vm1289, %v1296, %v1298
    %v1300 = vsel %vm1288, %v1278, %v1281
    %v1301 = vsel %vm1291, %v1287, 1326507024
    %v1302 = vsel %vm1290, %v1284, %v1301
    %v1303 = vsel %vm1289, %v1300, %v1302
    %v1304 = vshll.u32 %v1264, 8
    %v1305 = vand.u32 %v1304, 65535
    %v1306 = vshrl.u32 %v1304, 16
    %v1307 = vand.u32 %v1303, 65535
    %v1308 = vshrl.u32 %v1303, 16
    %v1309 = vmul.u32 %v1305, %v1307
    %v1310 = vmul.u32 %v1305, %v1308
    %v1311 = vmul.u32 %v1306, %v1307
    %v1312 = vmul.u32 %v1306, %v1308
    %v1313 = vshll.u32 %v1310, 16
    %v1314 = vshrl.u32 %v1310, 16
    %v1315 = vshll.u32 %v1311, 16
    %v1316 = vshrl.u32 %v1311, 16
    %vm1317 = vc.u32 %v1309, %v1313
    %v1318 = vsel %vm1317, 1, 0
    %v1319 = vadd.s32 %v1309, %v1313
    %v1320 = vadd.s32 %v1312, %v1318
    %vm1321 = vc.u32 %v1319, %v1315
    %v1322 = vsel %vm1321, 1, 0
    %v1323 = vadd.s32 %v1319, %v1315
    %v1324 = vadd.s32 %v1320, %v1322
    %v1325 = vadd.s32 %v1324, %v1314
    %v1326 = vadd.s32 %v1325, %v1316
    %v1327 = vand.u32 %v1304, 65535
    %v1328 = vshrl.u32 %v1304, 16
    %v1329 = vand.u32 %v1299, 65535
    %v1330 = vshrl.u32 %v1299, 16
    %v1331 = vmul.u32 %v1327, %v1329
    %v1332 = vmul.u32 %v1327, %v1330
    %v1333 = vmul.u32 %v1328, %v1329
    %v1334 = vmul.u32 %v1328, %v1330
    %v1335 = vshll.u32 %v1332, 16
    %v1336 = vshrl.u32 %v1332, 16
    %v1337 = vshll.u32 %v1333, 16
    %v1338 = vshrl.u32 %v1333, 16
    %vm1339 = vc.u32 %v1331, %v1335
    %v1340 = vsel %vm1339, 1, 0
    %v1341 = vadd.s32 %v1331, %v1335
    %v1342 = vadd.s32 %v1334, %v1340
    %vm1343 = vc.u32 %v1341, %v1337
    %v1344 = vsel %vm1343, 1, 0
    %v1345 = vadd.s32 %v1341, %v1337
    %v1346 = vadd.s32 %v1342, %v1344
    %v1347 = vadd.s32 %v1346, %v1336
    %v1348 = vadd.s32 %v1347, %v1338
    %v1349 = vmul.u32 %v1304, %v1295
    %v1350 = vadd.s32 %v1326, %v1345
    %vm1351 = vc.u32 %v1326, %v1345
    %v1352 = vadd.s32 %v1348, 1
    %v1353 = vsel %vm1351, %v1352, %v1348
    %v1354 = vadd.s32 %v1349, %v1353
    %v1355 = vadd.s32 %v1354, 536870912
    %v1356 = vshrl.u32 %v1355, 30
    %v1357 = vshll.u32 %v1356, 30
    %v1358 = vsub.s32 %v1354, %v1357
    %vm1359 = vcmp.lt.s32.totalorder %v1358, 0
    %v1360 = vsub.s32 0, %v1358
    %v1361 = vsel %vm1359, %v1360, %v1358
    %v1362 = vclz %v1361
    %v1363 = vsub.s32 %v1362, 2
    %vm1364 = vcmp.gt.s32.totalorder 0, %v1363
    %v1365 = vsel %vm1364, 0, %v1363
    %v1366 = vsub.s32 32, %v1365
    %v1367 = vshll.u32 %v1358, %v1365
    %v1368 = vshrl.u32 %v1350, %v1366
    %v1369 = vor.u32 %v1367, %v1368
    %v1370 = vsub.s32 4294967266, %v1365
    %v1371 = vadd.s32 %v1370, 127
    %v1372 = vshll.u32 %v1371, 23
    %v1373 = vor.u32 4788187, %v1372
    %v1374 = vand.u32 2147483647, %v1373
    %v1376 = vcvt.s32.f32 %v1369
    %v1377 = vmul.f32 %v1376, %v1374
    %v1378 = vxor.u32 %v1377, 2147483648
    %v1379 = vsel %vm1258, %v1378, %v1377
    %v1380 = vsub.s32 4, %v1356
    %v1381 = vsel %vm1258, %v1380, %v1356
    %v1382 = vsel %vm1257, %v298, %v1379
    %v1383 = vsel %vm1257, 0, %v1381
    %v1384 = vmul.f32 %v1382, %v1382
    %v1385 = vmul.f32 %v1384, -0.001358992
    %v1386 = vadd.f32 %v1385, 0.041655596
    %v1387 = vmul.f32 %v1384, %v1386
    %v1388 = vadd.f32 %v1387, -0.4999988
    %v1389 = vmul.f32 %v1384, %v1388
    %v1390 = vadd.f32 1.0, %v1389
    %v1391 = vmul.f32 %v1382, %v1382
    %v1392 = vmul.f32 %v1391, -0.00019511016
    %v1393 = vadd.f32 %v1392, 0.008332121
    %v1394 = vmul.f32 %v1391, %v1393
    %v1395 = vadd.f32 %v1394, -0.16666654
    %v1396 = vmul.f32 %v1391, %v1395
    %v1397 = vadd.f32 %v1396, 1.0
    %v1398 = vmul.f32 %v1397, %v1382
    %vm1399 = vweird.f32 %v298
    %v1400 = vadd.s32 %v1383, 3
    %v1401 = vand.u32 %v1400, 3
    %vm1402 = vcmp.lt.s32.totalorder %v1401, 2
    %vm1403 = vcmp.eq.s32.totalorder %v1401, 0
    %v1404 = vxor.u32 %v1398, 2147483648
    %v1405 = vsel %vm1403, %v1390, %v1404
    %vm1406 = vcmp.eq.s32.totalorder %v1401, 2
    %v1407 = vxor.u32 %v1390, 2147483648
    %v1408 = vsel %vm1406, %v1407, %v1398
    %v1409 = vsel %vm1402, %v1405, %v1408
    %v1410 = vsel %vm1399, nan, %v1409
    %v1411 = vand.u32 2147483647, %v321
    %vm1412 = vcmp.le.f32.partialorder %v1411, 0.7853982
    %vm1413 = vcmp.lt.s32.totalorder %v321, 0
    %v1414 = vand.u32 %v321, 2139095040
    %v1415 = vshrl.u32 %v1414, 23
    %v1416 = vsub.s32 %v1415, 127
    %v1417 = vand.u32 2147483647, %v321
    %v1418 = vand.u32 %v1417, 8388607
    %v1419 = vor.u32 %v1418, 8388608
    %v1420 = vsub.s32 0, %v1419
    %v1421 = vadd.s32 %v1416, 1
    %vm1422 = vcmp.gt.s32.totalorder %v1421, 0
    %v1423 = vsel %vm1422, %v1421, 0
    %v1424 = vshrl.u32 %v1423, 5
    %v1425 = vand.u32 %v1423, 31
    %v1426 = vsub.s32 32, %v1425
    %v1427 = vshrl.u32 683565275, %v1426
    %v1428 = vshll.u32 683565275, %v1425
    %v1429 = vshrl.u32 2475754826, %v1426
    %v1430 = vor.u32 %v1428, %v1429
    %v1431 = vshll.u32 2475754826, %v1425
    %v1432 = vshrl.u32 2131351028, %v1426
    %v1433 = vor.u32 %v1431, %v1432
    %v1434 = vshll.u32 2131351028, %v1425
    %v1435 = vshrl.u32 2102212464, %v1426
    %v1436 = vor.u32 %v1434, %v1435
    %v1437 = vshll.u32 2102212464, %v1425
    %v1438 = vshrl.u32 920167782, %v1426
    %v1439 = vor.u32 %v1437, %v1438
    %v1440 = vshll.u32 920167782, %v1425
    %v1441 = vshrl.u32 1326507024, %v1426
    %v1442 = vor.u32 %v1440, %v1441
    %vm1443 = vcmp.lt.s32.totalorder %v1424, 1
    %vm1444 = vcmp.lt.s32.totalorder %v1424, 2
    %vm1445 = vcmp.lt.s32.totalorder %v1424, 3
    %vm1446 = vcmp.lt.s32.totalorder %v1424, 4
    %v1447 = vsel %vm1443, %v1427, %v1430
    %v1448 = vsel %vm1446, %v1436, 2102212464
    %v1449 = vsel %vm1445, %v1433, %v1448
    %v1450 = vsel %vm1444, %v1447, %v1449
    %v1451 = vsel %vm1443, %v1430, %v1433
    %v1452 = vsel %vm1446, %v1439, 920167782
    %v1453 = vsel %vm1445, %v1436, %v1452
    %v1454 = vsel %vm1444, %v1451, %v1453
    %v1455 = vsel %vm1443, %v1433, %v1436
    %v1456 = vsel %vm1446, %v1442, 1326507024
    %v1457 = vsel %vm1445, %v1439, %v1456
    %v1458 = vsel %vm1444, %v1455, %v1457
    %v1459 = vshll.u32 %v1419, 8
    %v1460 = vand.u32 %v1459, 65535
    %v1461 = vshrl.u32 %v1459, 16
    %v1462 = vand.u32 %v1458, 65535
    %v1463 = vshrl.u32 %v1458, 16
    %v1464 = vmul.u32 %v1460, %v1462
    %v1465 = vmul.u32 %v1460, %v1463
    %v1466 = vmul.u32 %v1461, %v1462
    %v1467 = vmul.u32 %v1461, %v1463
    %v1468 = vshll.u32 %v1465, 16
    %v1469 = vshrl.u32 %v1465, 16
    %v1470 = vshll.u32 %v1466, 16
    %v1471 = vshrl.u32 %v1466, 16
    %vm1472 = vc.u32 %v1464, %v1468
    %v1473 = vsel %vm1472, 1, 0
    %v1474 = vadd.s32 %v1464, %v1468
    %v1475 = vadd.s32 %v1467, %v1473
    %vm1476 = vc.u32 %v1474, %v1470
    %v1477 = vsel %vm1476, 1, 0
    %v1478 = vadd.s32 %v1474, %v1470
    %v1479 = vadd.s32 %v1475, %v1477
    %v1480 = vadd.s32 %v1479, %v1469
    %v1481 = vadd.s32 %v1480, %v1471
    %v1482 = vand.u32 %v1459, 65535
    %v1483 = vshrl.u32 %v1459, 16
    %v1484 = vand.u32 %v1454, 65535
    %v1485 = vshrl.u32 %v1454, 16
    %v1486 = vmul.u32 %v1482, %v1484
    %v1487 = vmul.u32 %v1482, %v1485
    %v1488 = vmul.u32 %v1483, %v1484
    %v1489 = vmul.u32 %v1483, %v1485
    %v1490 = vshll.u32 %v1487, 16
    %v1491 = vshrl.u32 %v1487, 16
    %v1492 = vshll.u32 %v1488, 16
    %v1493 = vshrl.u32 %v1488, 16
    %vm1494 = vc.u32 %v1486, %v1490
    %v1495 = vsel %vm1494, 1, 0
    %v1496 = vadd.s32 %v1486, %v1490
    %v1497 = vadd.s32 %v1489, %v1495
    %vm1498 = vc.u32 %v1496, %v1492
    %v1499 = vsel %vm1498, 1, 0
    %v1500 = vadd.s32 %v1496, %v1492
    %v1501 = vadd.s32 %v1497, %v1499
    %v1502 = vadd.s32 %v1501, %v1491
    %v1503 = vadd.s32 %v1502, %v1493
    %v1504 = vmul.u32 %v1459, %v1450
    %v1505 = vadd.s32 %v1481, %v1500
    %vm1506 = vc.u32 %v1481, %v1500
    %v1507 = vadd.s32 %v1503, 1
    %v1508 = vsel %vm1506, %v1507, %v1503
    %v1509 = vadd.s32 %v1504, %v1508
    %v1510 = vadd.s32 %v1509, 536870912
    %v1511 = vshrl.u32 %v1510, 30
    %v1512 = vshll.u32 %v1511, 30
    %v1513 = vsub.s32 %v1509, %v1512
    %vm1514 = vcmp.lt.s32.totalorder %v1513, 0
    %v1515 = vsub.s32 0, %v1513
    %v1516 = vsel %vm1514, %v1515, %v1513
    %v1517 = vclz %v1516
    %v1518 = vsub.s32 %v1517, 2
    %vm1519 = vcmp.gt.s32.totalorder 0, %v1518
    %v1520 = vsel %vm1519, 0, %v1518
    %v1521 = vsub.s32 32, %v1520
    %v1522 = vshll.u32 %v1513, %v1520
    %v1523 = vshrl.u32 %v1505, %v1521
    %v1524 = vor.u32 %v1522, %v1523
    %v1525 = vsub.s32 4294967266, %v1520
    %v1526 = vadd.s32 %v1525, 127
    %v1527 = vshll.u32 %v1526, 23
    %v1528 = vor.u32 4788187, %v1527
    %v1529 = vand.u32 2147483647, %v1528
    %v1531 = vcvt.s32.f32 %v1524
    %v1532 = vmul.f32 %v1531, %v1529
    %v1533 = vxor.u32 %v1532, 2147483648
    %v1534 = vsel %vm1413, %v1533, %v1532
    %v1535 = vsub.s32 4, %v1511
    %v1536 = vsel %vm1413, %v1535, %v1511
    %v1537 = vsel %vm1412, %v321, %v1534
    %v1538 = vsel %vm1412, 0, %v1536
    %v1539 = vmul.f32 %v1537, %v1537
    %v1540 = vmul.f32 %v1539, -0.001358992
    %v1541 = vadd.f32 %v1540, 0.041655596
    %v1542 = vmul.f32 %v1539, %v1541
    %v1543 = vadd.f32 %v1542, -0.4999988
    %v1544 = vmul.f32 %v1539, %v1543
    %v1545 = vadd.f32 1.0, %v1544
    %v1546 = vmul.f32 %v1537, %v1537
    %v1547 = vmul.f32 %v1546, -0.00019511016
    %v1548 = vadd.f32 %v1547, 0.008332121
    %v1549 = vmul.f32 %v1546, %v1548
    %v1550 = vadd.f32 %v1549, -0.16666654
    %v1551 = vmul.f32 %v1546, %v1550
    %v1552 = vadd.f32 %v1551, 1.0
    %v1553 = vmul.f32 %v1552, %v1537
    %vm1554 = vweird.f32 %v321
    %v1555 = vadd.s32 %v1538, 3
    %v1556 = vand.u32 %v1555, 3
    %vm1557 = vcmp.lt.s32.totalorder %v1556, 2
    %vm1558 = vcmp.eq.s32.totalorder %v1556, 0
    %v1559 = vxor.u32 %v1553, 2147483648
    %v1560 = vsel %vm1558, %v1545, %v1559
    %vm1561 = vcmp.eq.s32.totalorder %v1556, 2
    %v1562 = vxor.u32 %v1545, 2147483648
    %v1563 = vsel %vm1561, %v1562, %v1553
    %v1564 = vsel %vm1557, %v1560, %v1563
    %v1565 = vsel %vm1554, nan, %v1564
    %v1566 = vand.u32 2147483647, %v163
    %vm1567 = vcmp.le.f32.partialorder %v1566, 0.7853982
    %vm1568 = vcmp.lt.s32.totalorder %v163, 0
    %v1569 = vand.u32 %v163, 2139095040
    %v1570 = vshrl.u32 %v1569, 23
    %v1571 = vsub.s32 %v1570, 127
    %v1572 = vand.u32 2147483647, %v163
    %v1573 = vand.u32 %v1572, 8388607
    %v1574 = vor.u32 %v1573, 8388608
    %v1575 = vsub.s32 0, %v1574
    %v1576 = vadd.s32 %v1571, 1
    %vm1577 = vcmp.gt.s32.totalorder %v1576, 0
    %v1578 = vsel %vm1577, %v1576, 0
    %v1579 = vshrl.u32 %v1578, 5
    %v1580 = vand.u32 %v1578, 31
    %v1581 = vsub.s32 32, %v1580
    %v1582 = vshrl.u32 683565275, %v1581
    %v1583 = vshll.u32 683565275, %v1580
    %v1584 = vshrl.u32 2475754826, %v1581
    %v1585 = vor.u32 %v1583, %v1584
    %v1586 = vshll.u32 2475754826, %v1580
    %v1587 = vshrl.u32 2131351028, %v1581
    %v1588 = vor.u32 %v1586, %v1587
    %v1589 = vshll.u32 2131351028, %v1580
    %v1590 = vshrl.u32 2102212464, %v1581
    %v1591 = vor.u32 %v1589, %v1590
    %v1592 = vshll.u32 2102212464, %v1580
    %v1593 = vshrl.u32 920167782, %v1581
    %v1594 = vor.u32 %v1592, %v1593
    %v1595 = vshll.u32 920167782, %v1580
    %v1596 = vshrl.u32 1326507024, %v1581
    %v1597 = vor.u32 %v1595, %v1596
    %vm1598 = vcmp.lt.s32.totalorder %v1579, 1
    %vm1599 = vcmp.lt.s32.totalorder %v1579, 2
    %vm1600 = vcmp.lt.s32.totalorder %v1579, 3
    %vm1601 = vcmp.lt.s32.totalorder %v1579, 4
    %v1602 = vsel %vm1598, %v1582, %v1585
    %v1603 = vsel %vm1601, %v1591, 2102212464
    %v1604 = vsel %vm1600, %v1588, %v1603
    %v1605 = vsel %vm1599, %v1602, %v1604
    %v1606 = vsel %vm1598, %v1585, %v1588
    %v1607 = vsel %vm1601, %v1594, 920167782
    %v1608 = vsel %vm1600, %v1591, %v1607
    %v1609 = vsel %vm1599, %v1606, %v1608
    %v1610 = vsel %vm1598, %v1588, %v1591
    %v1611 = vsel %vm1601, %v1597, 1326507024
    %v1612 = vsel %vm1600, %v1594, %v1611
    %v1613 = vsel %vm1599, %v1610, %v1612
    %v1614 = vshll.u32 %v1574, 8
    %v1615 = vand.u32 %v1614, 65535
    %v1616 = vshrl.u32 %v1614, 16
    %v1617 = vand.u32 %v1613, 65535
    %v1618 = vshrl.u32 %v1613, 16
    %v1619 = vmul.u32 %v1615, %v1617
    %v1620 = vmul.u32 %v1615, %v1618
    %v1621 = vmul.u32 %v1616, %v1617
    %v1622 = vmul.u32 %v1616, %v1618
    %v1623 = vshll.u32 %v1620, 16
    %v1624 = vshrl.u32 %v1620, 16
    %v1625 = vshll.u32 %v1621, 16
    %v1626 = vshrl.u32 %v1621, 16
    %vm1627 = vc.u32 %v1619, %v1623
    %v1628 = vsel %vm1627, 1, 0
    %v1629 = vadd.s32 %v1619, %v1623
    %v1630 = vadd.s32 %v1622, %v1628
    %vm1631 = vc.u32 %v1629, %v1625
    %v1632 = vsel %vm1631, 1, 0
    %v1633 = vadd.s32 %v1629, %v1625
    %v1634 = vadd.s32 %v1630, %v1632
    %v1635 = vadd.s32 %v1634, %v1624
    %v1636 = vadd.s32 %v1635, %v1626
    %v1637 = vand.u32 %v1614, 65535
    %v1638 = vshrl.u32 %v1614, 16
    %v1639 = vand.u32 %v1609, 65535
    %v1640 = vshrl.u32 %v1609, 16
    %v1641 = vmul.u32 %v1637, %v1639
    %v1642 = vmul.u32 %v1637, %v1640
    %v1643 = vmul.u32 %v1638, %v1639
    %v1644 = vmul.u32 %v1638, %v1640
    %v1645 = vshll.u32 %v1642, 16
    %v1646 = vshrl.u32 %v1642, 16
    %v1647 = vshll.u32 %v1643, 16
    %v1648 = vshrl.u32 %v1643, 16
    %vm1649 = vc.u32 %v1641, %v1645
    %v1650 = vsel %vm1649, 1, 0
    %v1651 = vadd.s32 %v1641, %v1645
    %v1652 = vadd.s32 %v1644, %v1650
    %vm1653 = vc.u32 %v1651, %v1647
    %v1654 = vsel %vm1653, 1, 0
    %v1655 = vadd.s32 %v1651, %v1647
    %v1656 = vadd.s32 %v1652, %v1654
    %v1657 = vadd.s32 %v1656, %v1646
    %v1658 = vadd.s32 %v1657, %v1648
    %v1659 = vmul.u32 %v1614, %v1605
    %v1660 = vadd.s32 %v1636, %v1655
    %vm1661 = vc.u32 %v1636, %v1655
    %v1662 = vadd.s32 %v1658, 1
    %v1663 = vsel %vm1661, %v1662, %v1658
    %v1664 = vadd.s32 %v1659, %v1663
    %v1665 = vadd.s32 %v1664, 536870912
    %v1666 = vshrl.u32 %v1665, 30
    %v1667 = vshll.u32 %v1666, 30
    %v1668 = vsub.s32 %v1664, %v1667
    %vm1669 = vcmp.lt.s32.totalorder %v1668, 0
    %v1670 = vsub.s32 0, %v1668
    %v1671 = vsel %vm1669, %v1670, %v1668
    %v1672 = vclz %v1671
    %v1673 = vsub.s32 %v1672, 2
    %vm1674 = vcmp.gt.s32.totalorder 0, %v1673
    %v1675 = vsel %vm1674, 0, %v1673
    %v1676 = vsub.s32 32, %v1675
    %v1677 = vshll.u32 %v1668, %v1675
    %v1678 = vshrl.u32 %v1660, %v1676
    %v1679 = vor.u32 %v1677, %v1678
    %v1680 = vsub.s32 4294967266, %v1675
    %v1681 = vadd.s32 %v1680, 127
    %v1682 = vshll.u32 %v1681, 23
    %v1683 = vor.u32 4788187, %v1682
    %v1684 = vand.u32 2147483647, %v1683
    %v1686 = vcvt.s32.f32 %v1679
    %v1687 = vmul.f32 %v1686, %v1684
    %v1688 = vxor.u32 %v1687, 2147483648
    %v1689 = vsel %vm1568, %v1688, %v1687
    %v1690 = vsub.s32 4, %v1666
    %v1691 = vsel %vm1568, %v1690, %v1666
    %v1692 = vsel %vm1567, %v163, %v1689
    %v1693 = vsel %vm1567, 0, %v1691
    %v1694 = vmul.f32 %v1692, %v1692
    %v1695 = vmul.f32 %v1694, -0.001358992
    %v1696 = vadd.f32 %v1695, 0.041655596
    %v1697 = vmul.f32 %v1694, %v1696
    %v1698 = vadd.f32 %v1697, -0.4999988
    %v1699 = vmul.f32 %v1694, %v1698
    %v1700 = vadd.f32 1.0, %v1699
    %v1701 = vmul.f32 %v1692, %v1692
    %v1702 = vmul.f32 %v1701, -0.00019511016
    %v1703 = vadd.f32 %v1702, 0.008332121
    %v1704 = vmul.f32 %v1701, %v1703
    %v1705 = vadd.f32 %v1704, -0.16666654
    %v1706 = vmul.f32 %v1701, %v1705
    %v1707 = vadd.f32 %v1706, 1.0
    %v1708 = vmul.f32 %v1707, %v1692
    %vm1709 = vweird.f32 %v163
    %v1710 = vadd.s32 %v1693, 3
    %v1711 = vand.u32 %v1710, 3
    %vm1712 = vcmp.lt.s32.totalorder %v1711, 2
    %vm1713 = vcmp.eq.s32.totalorder %v1711, 0
    %v1714 = vxor.u32 %v1708, 2147483648
    %v1715 = vsel %vm1713, %v1700, %v1714
    %vm1716 = vcmp.eq.s32.totalorder %v1711, 2
    %v1717 = vxor.u32 %v1700, 2147483648
    %v1718 = vsel %vm1716, %v1717, %v1708
    %v1719 = vsel %vm1712, %v1715, %v1718
    %v1720 = vsel %vm1709, nan, %v1719
    %v1721 = vand.u32 2147483647, %v186
    %vm1722 = vcmp.le.f32.partialorder %v1721, 0.7853982
    %vm1723 = vcmp.lt.s32.totalorder %v186, 0
    %v1724 = vand.u32 %v186, 2139095040
    %v1725 = vshrl.u32 %v1724, 23
    %v1726 = vsub.s32 %v1725, 127
    %v1727 = vand.u32 2147483647, %v186
    %v1728 = vand.u32 %v1727, 8388607
    %v1729 = vor.u32 %v1728, 8388608
    %v1730 = vsub.s32 0, %v1729
    %v1731 = vadd.s32 %v1726, 1
    %vm1732 = vcmp.gt.s32.totalorder %v1731, 0
    %v1733 = vsel %vm1732, %v1731, 0
    %v1734 = vshrl.u32 %v1733, 5
    %v1735 = vand.u32 %v1733, 31
    %v1736 = vsub.s32 32, %v1735
    %v1737 = vshrl.u32 683565275, %v1736
    %v1738 = vshll.u32 683565275, %v1735
    %v1739 = vshrl.u32 2475754826, %v1736
    %v1740 = vor.u32 %v1738, %v1739
    %v1741 = vshll.u32 2475754826, %v1735
    %v1742 = vshrl.u32 2131351028, %v1736
    %v1743 = vor.u32 %v1741, %v1742
    %v1744 = vshll.u32 2131351028, %v1735
    %v1745 = vshrl.u32 2102212464, %v1736
    %v1746 = vor.u32 %v1744, %v1745
    %v1747 = vshll.u32 2102212464, %v1735
    %v1748 = vshrl.u32 920167782, %v1736
    %v1749 = vor.u32 %v1747, %v1748
    %v1750 = vshll.u32 920167782, %v1735
    %v1751 = vshrl.u32 1326507024, %v1736
    %v1752 = vor.u32 %v1750, %v1751
    %vm1753 = vcmp.lt.s32.totalorder %v1734, 1
    %vm1754 = vcmp.lt.s32.totalorder %v1734, 2
    %vm1755 = vcmp.lt.s32.totalorder %v1734, 3
    %vm1756 = vcmp.lt.s32.totalorder %v1734, 4
    %v1757 = vsel %vm1753, %v1737, %v1740
    %v1758 = vsel %vm1756, %v1746, 2102212464
    %v1759 = vsel %vm1755, %v1743, %v1758
    %v1760 = vsel %vm1754, %v1757, %v1759
    %v1761 = vsel %vm1753, %v1740, %v1743
    %v1762 = vsel %vm1756, %v1749, 920167782
    %v1763 = vsel %vm1755, %v1746, %v1762
    %v1764 = vsel %vm1754, %v1761, %v1763
    %v1765 = vsel %vm1753, %v1743, %v1746
    %v1766 = vsel %vm1756, %v1752, 1326507024
    %v1767 = vsel %vm1755, %v1749, %v1766
    %v1768 = vsel %vm1754, %v1765, %v1767
    %v1769 = vshll.u32 %v1729, 8
    %v1770 = vand.u32 %v1769, 65535
    %v1771 = vshrl.u32 %v1769, 16
    %v1772 = vand.u32 %v1768, 65535
    %v1773 = vshrl.u32 %v1768, 16
    %v1774 = vmul.u32 %v1770, %v1772
    %v1775 = vmul.u32 %v1770, %v1773
    %v1776 = vmul.u32 %v1771, %v1772
    %v1777 = vmul.u32 %v1771, %v1773
    %v1778 = vshll.u32 %v1775, 16
    %v1779 = vshrl.u32 %v1775, 16
    %v1780 = vshll.u32 %v1776, 16
    %v1781 = vshrl.u32 %v1776, 16
    %vm1782 = vc.u32 %v1774, %v1778
    %v1783 = vsel %vm1782, 1, 0
    %v1784 = vadd.s32 %v1774, %v1778
    %v1785 = vadd.s32 %v1777, %v1783
    %vm1786 = vc.u32 %v1784, %v1780
    %v1787 = vsel %vm1786, 1, 0
    %v1788 = vadd.s32 %v1784, %v1780
    %v1789 = vadd.s32 %v1785, %v1787
    %v1790 = vadd.s32 %v1789, %v1779
    %v1791 = vadd.s32 %v1790, %v1781
    %v1792 = vand.u32 %v1769, 65535
    %v1793 = vshrl.u32 %v1769, 16
    %v1794 = vand.u32 %v1764, 65535
    %v1795 = vshrl.u32 %v1764, 16
    %v1796 = vmul.u32 %v1792, %v1794
    %v1797 = vmul.u32 %v1792, %v1795
    %v1798 = vmul.u32 %v1793, %v1794
    %v1799 = vmul.u32 %v1793, %v1795
    %v1800 = vshll.u32 %v1797, 16
    %v1801 = vshrl.u32 %v1797, 16
    %v1802 = vshll.u32 %v1798, 16
    %v1803 = vshrl.u32 %v1798, 16
    %vm1804 = vc.u32 %v1796, %v1800
    %v1805 = vsel %vm1804, 1, 0
    %v1806 = vadd.s32 %v1796, %v1800
    %v1807 = vadd.s32 %v1799, %v1805
    %vm1808 = vc.u32 %v1806, %v1802
    %v1809 = vsel %vm1808, 1, 0
    %v1810 = vadd.s32 %v1806, %v1802
    %v1811 = vadd.s32 %v1807, %v1809
    %v1812 = vadd.s32 %v1811, %v1801
    %v1813 = vadd.s32 %v1812, %v1803
    %v1814 = vmul.u32 %v1769, %v1760
    %v1815 = vadd.s32 %v1791, %v1810
    %vm1816 = vc.u32 %v1791, %v1810
    %v1817 = vadd.s32 %v1813, 1
    %v1818 = vsel %vm1816, %v1817, %v1813
    %v1819 = vadd.s32 %v1814, %v1818
    %v1820 = vadd.s32 %v1819, 536870912
    %v1821 = vshrl.u32 %v1820, 30
    %v1822 = vshll.u32 %v1821, 30
    %v1823 = vsub.s32 %v1819, %v1822
    %vm1824 = vcmp.lt.s32.totalorder %v1823, 0
    %v1825 = vsub.s32 0, %v1823
    %v1826 = vsel %vm1824, %v1825, %v1823
    %v1827 = vclz %v1826
    %v1828 = vsub.s32 %v1827, 2
    %vm1829 = vcmp.gt.s32.totalorder 0, %v1828
    %v1830 = vsel %vm1829, 0, %v1828
    %v1831 = vsub.s32 32, %v1830
    %v1832 = vshll.u32 %v1823, %v1830
    %v1833 = vshrl.u32 %v1815, %v1831
    %v1834 = vor.u32 %v1832, %v1833
    %v1835 = vsub.s32 4294967266, %v1830
    %v1836 = vadd.s32 %v1835, 127
    %v1837 = vshll.u32 %v1836, 23
    %v1838 = vor.u32 4788187, %v1837
    %v1839 = vand.u32 2147483647, %v1838
    %v1841 = vcvt.s32.f32 %v1834
    %v1842 = vmul.f32 %v1841, %v1839
    %v1843 = vxor.u32 %v1842, 2147483648
    %v1844 = vsel %vm1723, %v1843, %v1842
    %v1845 = vsub.s32 4, %v1821
    %v1846 = vsel %vm1723, %v1845, %v1821
    %v1847 = vsel %vm1722, %v186, %v1844
    %v1848 = vsel %vm1722, 0, %v1846
    %v1849 = vmul.f32 %v1847, %v1847
    %v1850 = vmul.f32 %v1849, -0.001358992
    %v1851 = vadd.f32 %v1850, 0.041655596
    %v1852 = vmul.f32 %v1849, %v1851
    %v1853 = vadd.f32 %v1852, -0.4999988
    %v1854 = vmul.f32 %v1849, %v1853
    %v1855 = vadd.f32 1.0, %v1854
    %v1856 = vmul.f32 %v1847, %v1847
    %v1857 = vmul.f32 %v1856, -0.00019511016
    %v1858 = vadd.f32 %v1857, 0.008332121
    %v1859 = vmul.f32 %v1856, %v1858
    %v1860 = vadd.f32 %v1859, -0.16666654
    %v1861 = vmul.f32 %v1856, %v1860
    %v1862 = vadd.f32 %v1861, 1.0
    %v1863 = vmul.f32 %v1862, %v1847
    %vm1864 = vweird.f32 %v186
    %v1865 = vadd.s32 %v1848, 3
    %v1866 = vand.u32 %v1865, 3
    %vm1867 = vcmp.lt.s32.totalorder %v1866, 2
    %vm1868 = vcmp.eq.s32.totalorder %v1866, 0
    %v1869 = vxor.u32 %v1863, 2147483648
    %v1870 = vsel %vm1868, %v1855, %v1869
    %vm1871 = vcmp.eq.s32.totalorder %v1866, 2
    %v1872 = vxor.u32 %v1855, 2147483648
    %v1873 = vsel %vm1871, %v1872, %v1863
    %v1874 = vsel %vm1867, %v1870, %v1873
    %v1875 = vsel %vm1864, nan, %v1874
    %v1876 = vand.u32 2147483647, %v209
    %vm1877 = vcmp.le.f32.partialorder %v1876, 0.7853982
    %vm1878 = vcmp.lt.s32.totalorder %v209, 0
    %v1879 = vand.u32 %v209, 2139095040
    %v1880 = vshrl.u32 %v1879, 23
    %v1881 = vsub.s32 %v1880, 127
    %v1882 = vand.u32 2147483647, %v209
    %v1883 = vand.u32 %v1882, 8388607
    %v1884 = vor.u32 %v1883, 8388608
    %v1885 = vsub.s32 0, %v1884
    %v1886 = vadd.s32 %v1881, 1
    %vm1887 = vcmp.gt.s32.totalorder %v1886, 0
    %v1888 = vsel %vm1887, %v1886, 0
    %v1889 = vshrl.u32 %v1888, 5
    %v1890 = vand.u32 %v1888, 31
    %v1891 = vsub.s32 32, %v1890
    %v1892 = vshrl.u32 683565275, %v1891
    %v1893 = vshll.u32 683565275, %v1890
    %v1894 = vshrl.u32 2475754826, %v1891
    %v1895 = vor.u32 %v1893, %v1894
    %v1896 = vshll.u32 2475754826, %v1890
    %v1897 = vshrl.u32 2131351028, %v1891
    %v1898 = vor.u32 %v1896, %v1897
    %v1899 = vshll.u32 2131351028, %v1890
    %v1900 = vshrl.u32 2102212464, %v1891
    %v1901 = vor.u32 %v1899, %v1900
    %v1902 = vshll.u32 2102212464, %v1890
    %v1903 = vshrl.u32 920167782, %v1891
    %v1904 = vor.u32 %v1902, %v1903
    %v1905 = vshll.u32 920167782, %v1890
    %v1906 = vshrl.u32 1326507024, %v1891
    %v1907 = vor.u32 %v1905, %v1906
    %vm1908 = vcmp.lt.s32.totalorder %v1889, 1
    %vm1909 = vcmp.lt.s32.totalorder %v1889, 2
    %vm1910 = vcmp.lt.s32.totalorder %v1889, 3
    %vm1911 = vcmp.lt.s32.totalorder %v1889, 4
    %v1912 = vsel %vm1908, %v1892, %v1895
    %v1913 = vsel %vm1911, %v1901, 2102212464
    %v1914 = vsel %vm1910, %v1898, %v1913
    %v1915 = vsel %vm1909, %v1912, %v1914
    %v1916 = vsel %vm1908, %v1895, %v1898
    %v1917 = vsel %vm1911, %v1904, 920167782
    %v1918 = vsel %vm1910, %v1901, %v1917
    %v1919 = vsel %vm1909, %v1916, %v1918
    %v1920 = vsel %vm1908, %v1898, %v1901
    %v1921 = vsel %vm1911, %v1907, 1326507024
    %v1922 = vsel %vm1910, %v1904, %v1921
    %v1923 = vsel %vm1909, %v1920, %v1922
    %v1924 = vshll.u32 %v1884, 8
    %v1925 = vand.u32 %v1924, 65535
    %v1926 = vshrl.u32 %v1924, 16
    %v1927 = vand.u32 %v1923, 65535
    %v1928 = vshrl.u32 %v1923, 16
    %v1929 = vmul.u32 %v1925, %v1927
    %v1930 = vmul.u32 %v1925, %v1928
    %v1931 = vmul.u32 %v1926, %v1927
    %v1932 = vmul.u32 %v1926, %v1928
    %v1933 = vshll.u32 %v1930, 16
    %v1934 = vshrl.u32 %v1930, 16
    %v1935 = vshll.u32 %v1931, 16
    %v1936 = vshrl.u32 %v1931, 16
    %vm1937 = vc.u32 %v1929, %v1933
    %v1938 = vsel %vm1937, 1, 0
    %v1939 = vadd.s32 %v1929, %v1933
    %v1940 = vadd.s32 %v1932, %v1938
    %vm1941 = vc.u32 %v1939, %v1935
    %v1942 = vsel %vm1941, 1, 0
    %v1943 = vadd.s32 %v1939, %v1935
    %v1944 = vadd.s32 %v1940, %v1942
    %v1945 = vadd.s32 %v1944, %v1934
    %v1946 = vadd.s32 %v1945, %v1936
    %v1947 = vand.u32 %v1924, 65535
    %v1948 = vshrl.u32 %v1924, 16
    %v1949 = vand.u32 %v1919, 65535
    %v1950 = vshrl.u32 %v1919, 16
    %v1951 = vmul.u32 %v1947, %v1949
    %v1952 = vmul.u32 %v1947, %v1950
    %v1953 = vmul.u32 %v1948, %v1949
    %v1954 = vmul.u32 %v1948, %v1950
    %v1955 = vshll.u32 %v1952, 16
    %v1956 = vshrl.u32 %v1952, 16
    %v1957 = vshll.u32 %v1953, 16
    %v1958 = vshrl.u32 %v1953, 16
    %vm1959 = vc.u32 %v1951, %v1955
    %v1960 = vsel %vm1959, 1, 0
    %v1961 = vadd.s32 %v1951, %v1955
    %v1962 = vadd.s32 %v1954, %v1960
    %vm1963 = vc.u32 %v1961, %v1957
    %v1964 = vsel %vm1963, 1, 0
    %v1965 = vadd.s32 %v1961, %v1957
    %v1966 = vadd.s32 %v1962, %v1964
    %v1967 = vadd.s32 %v1966, %v1956
    %v1968 = vadd.s32 %v1967, %v1958
    %v1969 = vmul.u32 %v1924, %v1915
    %v1970 = vadd.s32 %v1946, %v1965
    %vm1971 = vc.u32 %v1946, %v1965
    %v1972 = vadd.s32 %v1968, 1
    %v1973 = vsel %vm1971, %v1972, %v1968
    %v1974 = vadd.s32 %v1969, %v1973
    %v1975 = vadd.s32 %v1974, 536870912
    %v1976 = vshrl.u32 %v1975, 30
    %v1977 = vshll.u32 %v1976, 30
    %v1978 = vsub.s32 %v1974, %v1977
    %vm1979 = vcmp.lt.s32.totalorder %v1978, 0
    %v1980 = vsub.s32 0, %v1978
    %v1981 = vsel %vm1979, %v1980, %v1978
    %v1982 = vclz %v1981
    %v1983 = vsub.s32 %v1982, 2
    %vm1984 = vcmp.gt.s32.totalorder 0, %v1983
    %v1985 = vsel %vm1984, 0, %v1983
    %v1986 = vsub.s32 32, %v1985
    %v1987 = vshll.u32 %v1978, %v1985
    %v1988 = vshrl.u32 %v1970, %v1986
    %v1989 = vor.u32 %v1987, %v1988
    %v1990 = vsub.s32 4294967266, %v1985
    %v1991 = vadd.s32 %v1990, 127
    %v1992 = vshll.u32 %v1991, 23
    %v1993 = vor.u32 4788187, %v1992
    %v1994 = vand.u32 2147483647, %v1993
    %v1996 = vcvt.s32.f32 %v1989
    %v1997 = vmul.f32 %v1996, %v1994
    %v1998 = vxor.u32 %v1997, 2147483648
    %v1999 = vsel %vm1878, %v1998, %v1997
    %v2000 = vsub.s32 4, %v1976
    %v2001 = vsel %vm1878, %v2000, %v1976
    %v2002 = vsel %vm1877, %v209, %v1999
    %v2003 = vsel %vm1877, 0, %v2001
    %v2004 = vmul.f32 %v2002, %v2002
    %v2005 = vmul.f32 %v2004, -0.001358992
    %v2006 = vadd.f32 %v2005, 0.041655596
    %v2007 = vmul.f32 %v2004, %v2006
    %v2008 = vadd.f32 %v2007, -0.4999988
    %v2009 = vmul.f32 %v2004, %v2008
    %v2010 = vadd.f32 1.0, %v2009
    %v2011 = vmul.f32 %v2002, %v2002
    %v2012 = vmul.f32 %v2011, -0.00019511016
    %v2013 = vadd.f32 %v2012, 0.008332121
    %v2014 = vmul.f32 %v2011, %v2013
    %v2015 = vadd.f32 %v2014, -0.16666654
    %v2016 = vmul.f32 %v2011, %v2015
    %v2017 = vadd.f32 %v2016, 1.0
    %v2018 = vmul.f32 %v2017, %v2002
    %vm2019 = vweird.f32 %v209
    %v2020 = vadd.s32 %v2003, 3
    %v2021 = vand.u32 %v2020, 3
    %vm2022 = vcmp.lt.s32.totalorder %v2021, 2
    %vm2023 = vcmp.eq.s32.totalorder %v2021, 0
    %v2024 = vxor.u32 %v2018, 2147483648
    %v2025 = vsel %vm2023, %v2010, %v2024
    %vm2026 = vcmp.eq.s32.totalorder %v2021, 2
    %v2027 = vxor.u32 %v2010, 2147483648
    %v2028 = vsel %vm2026, %v2027, %v2018
    %v2029 = vsel %vm2022, %v2025, %v2028
    %v2030 = vsel %vm2019, nan, %v2029
    %v2031 = vand.u32 2147483647, %v232
    %vm2032 = vcmp.le.f32.partialorder %v2031, 0.7853982
    %vm2033 = vcmp.lt.s32.totalorder %v232, 0
    %v2034 = vand.u32 %v232, 2139095040
    %v2035 = vshrl.u32 %v2034, 23
    %v2036 = vsub.s32 %v2035, 127
    %v2037 = vand.u32 2147483647, %v232
    %v2038 = vand.u32 %v2037, 8388607
    %v2039 = vor.u32 %v2038, 8388608
    %v2040 = vsub.s32 0, %v2039
    %v2041 = vadd.s32 %v2036, 1
    %vm2042 = vcmp.gt.s32.totalorder %v2041, 0
    %v2043 = vsel %vm2042, %v2041, 0
    %v2044 = vshrl.u32 %v2043, 5
    %v2045 = vand.u32 %v2043, 31
    %v2046 = vsub.s32 32, %v2045
    %v2047 = vshrl.u32 683565275, %v2046
    %v2048 = vshll.u32 683565275, %v2045
    %v2049 = vshrl.u32 2475754826, %v2046
    %v2050 = vor.u32 %v2048, %v2049
    %v2051 = vshll.u32 2475754826, %v2045
    %v2052 = vshrl.u32 2131351028, %v2046
    %v2053 = vor.u32 %v2051, %v2052
    %v2054 = vshll.u32 2131351028, %v2045
    %v2055 = vshrl.u32 2102212464, %v2046
    %v2056 = vor.u32 %v2054, %v2055
    %v2057 = vshll.u32 2102212464, %v2045
    %v2058 = vshrl.u32 920167782, %v2046
    %v2059 = vor.u32 %v2057, %v2058
    %v2060 = vshll.u32 920167782, %v2045
    %v2061 = vshrl.u32 1326507024, %v2046
    %v2062 = vor.u32 %v2060, %v2061
    %vm2063 = vcmp.lt.s32.totalorder %v2044, 1
    %vm2064 = vcmp.lt.s32.totalorder %v2044, 2
    %vm2065 = vcmp.lt.s32.totalorder %v2044, 3
    %vm2066 = vcmp.lt.s32.totalorder %v2044, 4
    %v2067 = vsel %vm2063, %v2047, %v2050
    %v2068 = vsel %vm2066, %v2056, 2102212464
    %v2069 = vsel %vm2065, %v2053, %v2068
    %v2070 = vsel %vm2064, %v2067, %v2069
    %v2071 = vsel %vm2063, %v2050, %v2053
    %v2072 = vsel %vm2066, %v2059, 920167782
    %v2073 = vsel %vm2065, %v2056, %v2072
    %v2074 = vsel %vm2064, %v2071, %v2073
    %v2075 = vsel %vm2063, %v2053, %v2056
    %v2076 = vsel %vm2066, %v2062, 1326507024
    %v2077 = vsel %vm2065, %v2059, %v2076
    %v2078 = vsel %vm2064, %v2075, %v2077
    %v2079 = vshll.u32 %v2039, 8
    %v2080 = vand.u32 %v2079, 65535
    %v2081 = vshrl.u32 %v2079, 16
    %v2082 = vand.u32 %v2078, 65535
    %v2083 = vshrl.u32 %v2078, 16
    %v2084 = vmul.u32 %v2080, %v2082
    %v2085 = vmul.u32 %v2080, %v2083
    %v2086 = vmul.u32 %v2081, %v2082
    %v2087 = vmul.u32 %v2081, %v2083
    %v2088 = vshll.u32 %v2085, 16
    %v2089 = vshrl.u32 %v2085, 16
    %v2090 = vshll.u32 %v2086, 16
    %v2091 = vshrl.u32 %v2086, 16
    %vm2092 = vc.u32 %v2084, %v2088
    %v2093 = vsel %vm2092, 1, 0
    %v2094 = vadd.s32 %v2084, %v2088
    %v2095 = vadd.s32 %v2087, %v2093
    %vm2096 = vc.u32 %v2094, %v2090
    %v2097 = vsel %vm2096, 1, 0
    %v2098 = vadd.s32 %v2094, %v2090
    %v2099 = vadd.s32 %v2095, %v2097
    %v2100 = vadd.s32 %v2099, %v2089
    %v2101 = vadd.s32 %v2100, %v2091
    %v2102 = vand.u32 %v2079, 65535
    %v2103 = vshrl.u32 %v2079, 16
    %v2104 = vand.u32 %v2074, 65535
    %v2105 = vshrl.u32 %v2074, 16
    %v2106 = vmul.u32 %v2102, %v2104
    %v2107 = vmul.u32 %v2102, %v2105
    %v2108 = vmul.u32 %v2103, %v2104
    %v2109 = vmul.u32 %v2103, %v2105
    %v2110 = vshll.u32 %v2107, 16
    %v2111 = vshrl.u32 %v2107, 16
    %v2112 = vshll.u32 %v2108, 16
    %v2113 = vshrl.u32 %v2108, 16
    %vm2114 = vc.u32 %v2106, %v2110
    %v2115 = vsel %vm2114, 1, 0
    %v2116 = vadd.s32 %v2106, %v2110
    %v2117 = vadd.s32 %v2109, %v2115
    %vm2118 = vc.u32 %v2116, %v2112
    %v2119 = vsel %vm2118, 1, 0
    %v2120 = vadd.s32 %v2116, %v2112
    %v2121 = vadd.s32 %v2117, %v2119
    %v2122 = vadd.s32 %v2121, %v2111
    %v2123 = vadd.s32 %v2122, %v2113
    %v2124 = vmul.u32 %v2079, %v2070
    %v2125 = vadd.s32 %v2101, %v2120
    %vm2126 = vc.u32 %v2101, %v2120
    %v2127 = vadd.s32 %v2123, 1
    %v2128 = vsel %vm2126, %v2127, %v2123
    %v2129 = vadd.s32 %v2124, %v2128
    %v2130 = vadd.s32 %v2129, 536870912
    %v2131 = vshrl.u32 %v2130, 30
    %v2132 = vshll.u32 %v2131, 30
    %v2133 = vsub.s32 %v2129, %v2132
    %vm2134 = vcmp.lt.s32.totalorder %v2133, 0
    %v2135 = vsub.s32 0, %v2133
    %v2136 = vsel %vm2134, %v2135, %v2133
    %v2137 = vclz %v2136
    %v2138 = vsub.s32 %v2137, 2
    %vm2139 = vcmp.gt.s32.totalorder 0, %v2138
    %v2140 = vsel %vm2139, 0, %v2138
    %v2141 = vsub.s32 32, %v2140
    %v2142 = vshll.u32 %v2133, %v2140
    %v2143 = vshrl.u32 %v2125, %v2141
    %v2144 = vor.u32 %v2142, %v2143
    %v2145 = vsub.s32 4294967266, %v2140
    %v2146 = vadd.s32 %v2145, 127
    %v2147 = vshll.u32 %v2146, 23
    %v2148 = vor.u32 4788187, %v2147
    %v2149 = vand.u32 2147483647, %v2148
    %v2151 = vcvt.s32.f32 %v2144
    %v2152 = vmul.f32 %v2151, %v2149
    %v2153 = vxor.u32 %v2152, 2147483648
    %v2154 = vsel %vm2033, %v2153, %v2152
    %v2155 = vsub.s32 4, %v2131
    %v2156 = vsel %vm2033, %v2155, %v2131
    %v2157 = vsel %vm2032, %v232, %v2154
    %v2158 = vsel %vm2032, 0, %v2156
    %v2159 = vmul.f32 %v2157, %v2157
    %v2160 = vmul.f32 %v2159, -0.001358992
    %v2161 = vadd.f32 %v2160, 0.041655596
    %v2162 = vmul.f32 %v2159, %v2161
    %v2163 = vadd.f32 %v2162, -0.4999988
    %v2164 = vmul.f32 %v2159, %v2163
    %v2165 = vadd.f32 1.0, %v2164
    %v2166 = vmul.f32 %v2157, %v2157
    %v2167 = vmul.f32 %v2166, -0.00019511016
    %v2168 = vadd.f32 %v2167, 0.008332121
    %v2169 = vmul.f32 %v2166, %v2168
    %v2170 = vadd.f32 %v2169, -0.16666654
    %v2171 = vmul.f32 %v2166, %v2170
    %v2172 = vadd.f32 %v2171, 1.0
    %v2173 = vmul.f32 %v2172, %v2157
    %vm2174 = vweird.f32 %v232
    %v2175 = vadd.s32 %v2158, 3
    %v2176 = vand.u32 %v2175, 3
    %vm2177 = vcmp.lt.s32.totalorder %v2176, 2
    %vm2178 = vcmp.eq.s32.totalorder %v2176, 0
    %v2179 = vxor.u32 %v2173, 2147483648
    %v2180 = vsel %vm2178, %v2165, %v2179
    %vm2181 = vcmp.eq.s32.totalorder %v2176, 2
    %v2182 = vxor.u32 %v2165, 2147483648
    %v2183 = vsel %vm2181, %v2182, %v2173
    %v2184 = vsel %vm2177, %v2180, %v2183
    %v2185 = vsel %vm2174, nan, %v2184
    %v2186 = vand.u32 2147483647, %v255
    %vm2187 = vcmp.le.f32.partialorder %v2186, 0.7853982
    %vm2188 = vcmp.lt.s32.totalorder %v255, 0
    %v2189 = vand.u32 %v255, 2139095040
    %v2190 = vshrl.u32 %v2189, 23
    %v2191 = vsub.s32 %v2190, 127
    %v2192 = vand.u32 2147483647, %v255
    %v2193 = vand.u32 %v2192, 8388607
    %v2194 = vor.u32 %v2193, 8388608
    %v2195 = vsub.s32 0, %v2194
    %v2196 = vadd.s32 %v2191, 1
    %vm2197 = vcmp.gt.s32.totalorder %v2196, 0
    %v2198 = vsel %vm2197, %v2196, 0
    %v2199 = vshrl.u32 %v2198, 5
    %v2200 = vand.u32 %v2198, 31
    %v2201 = vsub.s32 32, %v2200
    %v2202 = vshrl.u32 683565275, %v2201
    %v2203 = vshll.u32 683565275, %v2200
    %v2204 = vshrl.u32 2475754826, %v2201
    %v2205 = vor.u32 %v2203, %v2204
    %v2206 = vshll.u32 2475754826, %v2200
    %v2207 = vshrl.u32 2131351028, %v2201
    %v2208 = vor.u32 %v2206, %v2207
    %v2209 = vshll.u32 2131351028, %v2200
    %v2210 = vshrl.u32 2102212464, %v2201
    %v2211 = vor.u32 %v2209, %v2210
    %v2212 = vshll.u32 2102212464, %v2200
    %v2213 = vshrl.u32 920167782, %v2201
    %v2214 = vor.u32 %v2212, %v2213
    %v2215 = vshll.u32 920167782, %v2200
    %v2216 = vshrl.u32 1326507024, %v2201
    %v2217 = vor.u32 %v2215, %v2216
    %vm2218 = vcmp.lt.s32.totalorder %v2199, 1
    %vm2219 = vcmp.lt.s32.totalorder %v2199, 2
    %vm2220 = vcmp.lt.s32.totalorder %v2199, 3
    %vm2221 = vcmp.lt.s32.totalorder %v2199, 4
    %v2222 = vsel %vm2218, %v2202, %v2205
    %v2223 = vsel %vm2221, %v2211, 2102212464
    %v2224 = vsel %vm2220, %v2208, %v2223
    %v2225 = vsel %vm2219, %v2222, %v2224
    %v2226 = vsel %vm2218, %v2205, %v2208
    %v2227 = vsel %vm2221, %v2214, 920167782
    %v2228 = vsel %vm2220, %v2211, %v2227
    %v2229 = vsel %vm2219, %v2226, %v2228
    %v2230 = vsel %vm2218, %v2208, %v2211
    %v2231 = vsel %vm2221, %v2217, 1326507024
    %v2232 = vsel %vm2220, %v2214, %v2231
    %v2233 = vsel %vm2219, %v2230, %v2232
    %v2234 = vshll.u32 %v2194, 8
    %v2235 = vand.u32 %v2234, 65535
    %v2236 = vshrl.u32 %v2234, 16
    %v2237 = vand.u32 %v2233, 65535
    %v2238 = vshrl.u32 %v2233, 16
    %v2239 = vmul.u32 %v2235, %v2237
    %v2240 = vmul.u32 %v2235, %v2238
    %v2241 = vmul.u32 %v2236, %v2237
    %v2242 = vmul.u32 %v2236, %v2238
    %v2243 = vshll.u32 %v2240, 16
    %v2244 = vshrl.u32 %v2240, 16
    %v2245 = vshll.u32 %v2241, 16
    %v2246 = vshrl.u32 %v2241, 16
    %vm2247 = vc.u32 %v2239, %v2243
    %v2248 = vsel %vm2247, 1, 0
    %v2249 = vadd.s32 %v2239, %v2243
    %v2250 = vadd.s32 %v2242, %v2248
    %vm2251 = vc.u32 %v2249, %v2245
    %v2252 = vsel %vm2251, 1, 0
    %v2253 = vadd.s32 %v2249, %v2245
    %v2254 = vadd.s32 %v2250, %v2252
    %v2255 = vadd.s32 %v2254, %v2244
    %v2256 = vadd.s32 %v2255, %v2246
    %v2257 = vand.u32 %v2234, 65535
    %v2258 = vshrl.u32 %v2234, 16
    %v2259 = vand.u32 %v2229, 65535
    %v2260 = vshrl.u32 %v2229, 16
    %v2261 = vmul.u32 %v2257, %v2259
    %v2262 = vmul.u32 %v2257, %v2260
    %v2263 = vmul.u32 %v2258, %v2259
    %v2264 = vmul.u32 %v2258, %v2260
    %v2265 = vshll.u32 %v2262, 16
    %v2266 = vshrl.u32 %v2262, 16
    %v2267 = vshll.u32 %v2263, 16
    %v2268 = vshrl.u32 %v2263, 16
    %vm2269 = vc.u32 %v2261, %v2265
    %v2270 = vsel %vm2269, 1, 0
    %v2271 = vadd.s32 %v2261, %v2265
    %v2272 = vadd.s32 %v2264, %v2270
    %vm2273 = vc.u32 %v2271, %v2267
    %v2274 = vsel %vm2273, 1, 0
    %v2275 = vadd.s32 %v2271, %v2267
    %v2276 = vadd.s32 %v2272, %v2274
    %v2277 = vadd.s32 %v2276, %v2266
    %v2278 = vadd.s32 %v2277, %v2268
    %v2279 = vmul.u32 %v2234, %v2225
    %v2280 = vadd.s32 %v2256, %v2275
    %vm2281 = vc.u32 %v2256, %v2275
    %v2282 = vadd.s32 %v2278, 1
    %v2283 = vsel %vm2281, %v2282, %v2278
    %v2284 = vadd.s32 %v2279, %v2283
    %v2285 = vadd.s32 %v2284, 536870912
    %v2286 = vshrl.u32 %v2285, 30
    %v2287 = vshll.u32 %v2286, 30
    %v2288 = vsub.s32 %v2284, %v2287
    %vm2289 = vcmp.lt.s32.totalorder %v2288, 0
    %v2290 = vsub.s32 0, %v2288
    %v2291 = vsel %vm2289, %v2290, %v2288
    %v2292 = vclz %v2291
    %v2293 = vsub.s32 %v2292, 2
    %vm2294 = vcmp.gt.s32.totalorder 0, %v2293
    %v2295 = vsel %vm2294, 0, %v2293
    %v2296 = vsub.s32 32, %v2295
    %v2297 = vshll.u32 %v2288, %v2295
    %v2298 = vshrl.u32 %v2280, %v2296
    %v2299 = vor.u32 %v2297, %v2298
    %v2300 = vsub.s32 4294967266, %v2295
    %v2301 = vadd.s32 %v2300, 127
    %v2302 = vshll.u32 %v2301, 23
    %v2303 = vor.u32 4788187, %v2302
    %v2304 = vand.u32 2147483647, %v2303
    %v2306 = vcvt.s32.f32 %v2299
    %v2307 = vmul.f32 %v2306, %v2304
    %v2308 = vxor.u32 %v2307, 2147483648
    %v2309 = vsel %vm2188, %v2308, %v2307
    %v2310 = vsub.s32 4, %v2286
    %v2311 = vsel %vm2188, %v2310, %v2286
    %v2312 = vsel %vm2187, %v255, %v2309
    %v2313 = vsel %vm2187, 0, %v2311
    %v2314 = vmul.f32 %v2312, %v2312
    %v2315 = vmul.f32 %v2314, -0.001358992
    %v2316 = vadd.f32 %v2315, 0.041655596
    %v2317 = vmul.f32 %v2314, %v2316
    %v2318 = vadd.f32 %v2317, -0.4999988
    %v2319 = vmul.f32 %v2314, %v2318
    %v2320 = vadd.f32 1.0, %v2319
    %v2321 = vmul.f32 %v2312, %v2312
    %v2322 = vmul.f32 %v2321, -0.00019511016
    %v2323 = vadd.f32 %v2322, 0.008332121
    %v2324 = vmul.f32 %v2321, %v2323
    %v2325 = vadd.f32 %v2324, -0.16666654
    %v2326 = vmul.f32 %v2321, %v2325
    %v2327 = vadd.f32 %v2326, 1.0
    %v2328 = vmul.f32 %v2327, %v2312
    %vm2329 = vweird.f32 %v255
    %v2330 = vadd.s32 %v2313, 3
    %v2331 = vand.u32 %v2330, 3
    %vm2332 = vcmp.lt.s32.totalorder %v2331, 2
    %vm2333 = vcmp.eq.s32.totalorder %v2331, 0
    %v2334 = vxor.u32 %v2328, 2147483648
    %v2335 = vsel %vm2333, %v2320, %v2334
    %vm2336 = vcmp.eq.s32.totalorder %v2331, 2
    %v2337 = vxor.u32 %v2320, 2147483648
    %v2338 = vsel %vm2336, %v2337, %v2328
    %v2339 = vsel %vm2332, %v2335, %v2338
    %v2340 = vsel %vm2329, nan, %v2339
    %v2341 = vand.u32 2147483647, %v278
    %vm2342 = vcmp.le.f32.partialorder %v2341, 0.7853982
    %vm2343 = vcmp.lt.s32.totalorder %v278, 0
    %v2344 = vand.u32 %v278, 2139095040
    %v2345 = vshrl.u32 %v2344, 23
    %v2346 = vsub.s32 %v2345, 127
    %v2347 = vand.u32 2147483647, %v278
    %v2348 = vand.u32 %v2347, 8388607
    %v2349 = vor.u32 %v2348, 8388608
    %v2350 = vsub.s32 0, %v2349
    %v2351 = vadd.s32 %v2346, 1
    %vm2352 = vcmp.gt.s32.totalorder %v2351, 0
    %v2353 = vsel %vm2352, %v2351, 0
    %v2354 = vshrl.u32 %v2353, 5
    %v2355 = vand.u32 %v2353, 31
    %v2356 = vsub.s32 32, %v2355
    %v2357 = vshrl.u32 683565275, %v2356
    %v2358 = vshll.u32 683565275, %v2355
    %v2359 = vshrl.u32 2475754826, %v2356
    %v2360 = vor.u32 %v2358, %v2359
    %v2361 = vshll.u32 2475754826, %v2355
    %v2362 = vshrl.u32 2131351028, %v2356
    %v2363 = vor.u32 %v2361, %v2362
    %v2364 = vshll.u32 2131351028, %v2355
    %v2365 = vshrl.u32 2102212464, %v2356
    %v2366 = vor.u32 %v2364, %v2365
    %v2367 = vshll.u32 2102212464, %v2355
    %v2368 = vshrl.u32 920167782, %v2356
    %v2369 = vor.u32 %v2367, %v2368
    %v2370 = vshll.u32 920167782, %v2355
    %v2371 = vshrl.u32 1326507024, %v2356
    %v2372 = vor.u32 %v2370, %v2371
    %vm2373 = vcmp.lt.s32.totalorder %v2354, 1
    %vm2374 = vcmp.lt.s32.totalorder %v2354, 2
    %vm2375 = vcmp.lt.s32.totalorder %v2354, 3
    %vm2376 = vcmp.lt.s32.totalorder %v2354, 4
    %v2377 = vsel %vm2373, %v2357, %v2360
    %v2378 = vsel %vm2376, %v2366, 2102212464
    %v2379 = vsel %vm2375, %v2363, %v2378
    %v2380 = vsel %vm2374, %v2377, %v2379
    %v2381 = vsel %vm2373, %v2360, %v2363
    %v2382 = vsel %vm2376, %v2369, 920167782
    %v2383 = vsel %vm2375, %v2366, %v2382
    %v2384 = vsel %vm2374, %v2381, %v2383
    %v2385 = vsel %vm2373, %v2363, %v2366
    %v2386 = vsel %vm2376, %v2372, 1326507024
    %v2387 = vsel %vm2375, %v2369, %v2386
    %v2388 = vsel %vm2374, %v2385, %v2387
    %v2389 = vshll.u32 %v2349, 8
    %v2390 = vand.u32 %v2389, 65535
    %v2391 = vshrl.u32 %v2389, 16
    %v2392 = vand.u32 %v2388, 65535
    %v2393 = vshrl.u32 %v2388, 16
    %v2394 = vmul.u32 %v2390, %v2392
    %v2395 = vmul.u32 %v2390, %v2393
    %v2396 = vmul.u32 %v2391, %v2392
    %v2397 = vmul.u32 %v2391, %v2393
    %v2398 = vshll.u32 %v2395, 16
    %v2399 = vshrl.u32 %v2395, 16
    %v2400 = vshll.u32 %v2396, 16
    %v2401 = vshrl.u32 %v2396, 16
    %vm2402 = vc.u32 %v2394, %v2398
    %v2403 = vsel %vm2402, 1, 0
    %v2404 = vadd.s32 %v2394, %v2398
    %v2405 = vadd.s32 %v2397, %v2403
    %vm2406 = vc.u32 %v2404, %v2400
    %v2407 = vsel %vm2406, 1, 0
    %v2408 = vadd.s32 %v2404, %v2400
    %v2409 = vadd.s32 %v2405, %v2407
    %v2410 = vadd.s32 %v2409, %v2399
    %v2411 = vadd.s32 %v2410, %v2401
    %v2412 = vand.u32 %v2389, 65535
    %v2413 = vshrl.u32 %v2389, 16
    %v2414 = vand.u32 %v2384, 65535
    %v2415 = vshrl.u32 %v2384, 16
    %v2416 = vmul.u32 %v2412, %v2414
    %v2417 = vmul.u32 %v2412, %v2415
    %v2418 = vmul.u32 %v2413, %v2414
    %v2419 = vmul.u32 %v2413, %v2415
    %v2420 = vshll.u32 %v2417, 16
    %v2421 = vshrl.u32 %v2417, 16
    %v2422 = vshll.u32 %v2418, 16
    %v2423 = vshrl.u32 %v2418, 16
    %vm2424 = vc.u32 %v2416, %v2420
    %v2425 = vsel %vm2424, 1, 0
    %v2426 = vadd.s32 %v2416, %v2420
    %v2427 = vadd.s32 %v2419, %v2425
    %vm2428 = vc.u32 %v2426, %v2422
    %v2429 = vsel %vm2428, 1, 0
    %v2430 = vadd.s32 %v2426, %v2422
    %v2431 = vadd.s32 %v2427, %v2429
    %v2432 = vadd.s32 %v2431, %v2421
    %v2433 = vadd.s32 %v2432, %v2423
    %v2434 = vmul.u32 %v2389, %v2380
    %v2435 = vadd.s32 %v2411, %v2430
    %vm2436 = vc.u32 %v2411, %v2430
    %v2437 = vadd.s32 %v2433, 1
    %v2438 = vsel %vm2436, %v2437, %v2433
    %v2439 = vadd.s32 %v2434, %v2438
    %v2440 = vadd.s32 %v2439, 536870912
    %v2441 = vshrl.u32 %v2440, 30
    %v2442 = vshll.u32 %v2441, 30
    %v2443 = vsub.s32 %v2439, %v2442
    %vm2444 = vcmp.lt.s32.totalorder %v2443, 0
    %v2445 = vsub.s32 0, %v2443
    %v2446 = vsel %vm2444, %v2445, %v2443
    %v2447 = vclz %v2446
    %v2448 = vsub.s32 %v2447, 2
    %vm2449 = vcmp.gt.s32.totalorder 0, %v2448
    %v2450 = vsel %vm2449, 0, %v2448
    %v2451 = vsub.s32 32, %v2450
    %v2452 = vshll.u32 %v2443, %v2450
    %v2453 = vshrl.u32 %v2435, %v2451
    %v2454 = vor.u32 %v2452, %v2453
    %v2455 = vsub.s32 4294967266, %v2450
    %v2456 = vadd.s32 %v2455, 127
    %v2457 = vshll.u32 %v2456, 23
    %v2458 = vor.u32 4788187, %v2457
    %v2459 = vand.u32 2147483647, %v2458
    %v2461 = vcvt.s32.f32 %v2454
    %v2462 = vmul.f32 %v2461, %v2459
    %v2463 = vxor.u32 %v2462, 2147483648
    %v2464 = vsel %vm2343, %v2463, %v2462
    %v2465 = vsub.s32 4, %v2441
    %v2466 = vsel %vm2343, %v2465, %v2441
    %v2467 = vsel %vm2342, %v278, %v2464
    %v2468 = vsel %vm2342, 0, %v2466
    %v2469 = vmul.f32 %v2467, %v2467
    %v2470 = vmul.f32 %v2469, -0.001358992
    %v2471 = vadd.f32 %v2470, 0.041655596
    %v2472 = vmul.f32 %v2469, %v2471
    %v2473 = vadd.f32 %v2472, -0.4999988
    %v2474 = vmul.f32 %v2469, %v2473
    %v2475 = vadd.f32 1.0, %v2474
    %v2476 = vmul.f32 %v2467, %v2467
    %v2477 = vmul.f32 %v2476, -0.00019511016
    %v2478 = vadd.f32 %v2477, 0.008332121
    %v2479 = vmul.f32 %v2476, %v2478
    %v2480 = vadd.f32 %v2479, -0.16666654
    %v2481 = vmul.f32 %v2476, %v2480
    %v2482 = vadd.f32 %v2481, 1.0
    %v2483 = vmul.f32 %v2482, %v2467
    %vm2484 = vweird.f32 %v278
    %v2485 = vadd.s32 %v2468, 3
    %v2486 = vand.u32 %v2485, 3
    %vm2487 = vcmp.lt.s32.totalorder %v2486, 2
    %vm2488 = vcmp.eq.s32.totalorder %v2486, 0
    %v2489 = vxor.u32 %v2483, 2147483648
    %v2490 = vsel %vm2488, %v2475, %v2489
    %vm2491 = vcmp.eq.s32.totalorder %v2486, 2
    %v2492 = vxor.u32 %v2475, 2147483648
    %v2493 = vsel %vm2491, %v2492, %v2483
    %v2494 = vsel %vm2487, %v2490, %v2493
    %v2495 = vsel %vm2484, nan, %v2494
    %v2496 = vand.u32 2147483647, %v301
    %vm2497 = vcmp.le.f32.partialorder %v2496, 0.7853982
    %vm2498 = vcmp.lt.s32.totalorder %v301, 0
    %v2499 = vand.u32 %v301, 2139095040
    %v2500 = vshrl.u32 %v2499, 23
    %v2501 = vsub.s32 %v2500, 127
    %v2502 = vand.u32 2147483647, %v301
    %v2503 = vand.u32 %v2502, 8388607
    %v2504 = vor.u32 %v2503, 8388608
    %v2505 = vsub.s32 0, %v2504
    %v2506 = vadd.s32 %v2501, 1
    %vm2507 = vcmp.gt.s32.totalorder %v2506, 0
    %v2508 = vsel %vm2507, %v2506, 0
    %v2509 = vshrl.u32 %v2508, 5
    %v2510 = vand.u32 %v2508, 31
    %v2511 = vsub.s32 32, %v2510
    %v2512 = vshrl.u32 683565275, %v2511
    %v2513 = vshll.u32 683565275, %v2510
    %v2514 = vshrl.u32 2475754826, %v2511
    %v2515 = vor.u32 %v2513, %v2514
    %v2516 = vshll.u32 2475754826, %v2510
    %v2517 = vshrl.u32 2131351028, %v2511
    %v2518 = vor.u32 %v2516, %v2517
    %v2519 = vshll.u32 2131351028, %v2510
    %v2520 = vshrl.u32 2102212464, %v2511
    %v2521 = vor.u32 %v2519, %v2520
    %v2522 = vshll.u32 2102212464, %v2510
    %v2523 = vshrl.u32 920167782, %v2511
    %v2524 = vor.u32 %v2522, %v2523
    %v2525 = vshll.u32 920167782, %v2510
    %v2526 = vshrl.u32 1326507024, %v2511
    %v2527 = vor.u32 %v2525, %v2526
    %vm2528 = vcmp.lt.s32.totalorder %v2509, 1
    %vm2529 = vcmp.lt.s32.totalorder %v2509, 2
    %vm2530 = vcmp.lt.s32.totalorder %v2509, 3
    %vm2531 = vcmp.lt.s32.totalorder %v2509, 4
    %v2532 = vsel %vm2528, %v2512, %v2515
    %v2533 = vsel %vm2531, %v2521, 2102212464
    %v2534 = vsel %vm2530, %v2518, %v2533
    %v2535 = vsel %vm2529, %v2532, %v2534
    %v2536 = vsel %vm2528, %v2515, %v2518
    %v2537 = vsel %vm2531, %v2524, 920167782
    %v2538 = vsel %vm2530, %v2521, %v2537
    %v2539 = vsel %vm2529, %v2536, %v2538
    %v2540 = vsel %vm2528, %v2518, %v2521
    %v2541 = vsel %vm2531, %v2527, 1326507024
    %v2542 = vsel %vm2530, %v2524, %v2541
    %v2543 = vsel %vm2529, %v2540, %v2542
    %v2544 = vshll.u32 %v2504, 8
    %v2545 = vand.u32 %v2544, 65535
    %v2546 = vshrl.u32 %v2544, 16
    %v2547 = vand.u32 %v2543, 65535
    %v2548 = vshrl.u32 %v2543, 16
    %v2549 = vmul.u32 %v2545, %v2547
    %v2550 = vmul.u32 %v2545, %v2548
    %v2551 = vmul.u32 %v2546, %v2547
    %v2552 = vmul.u32 %v2546, %v2548
    %v2553 = vshll.u32 %v2550, 16
    %v2554 = vshrl.u32 %v2550, 16
    %v2555 = vshll.u32 %v2551, 16
    %v2556 = vshrl.u32 %v2551, 16
    %vm2557 = vc.u32 %v2549, %v2553
    %v2558 = vsel %vm2557, 1, 0
    %v2559 = vadd.s32 %v2549, %v2553
    %v2560 = vadd.s32 %v2552, %v2558
    %vm2561 = vc.u32 %v2559, %v2555
    %v2562 = vsel %vm2561, 1, 0
    %v2563 = vadd.s32 %v2559, %v2555
    %v2564 = vadd.s32 %v2560, %v2562
    %v2565 = vadd.s32 %v2564, %v2554
    %v2566 = vadd.s32 %v2565, %v2556
    %v2567 = vand.u32 %v2544, 65535
    %v2568 = vshrl.u32 %v2544, 16
    %v2569 = vand.u32 %v2539, 65535
    %v2570 = vshrl.u32 %v2539, 16
    %v2571 = vmul.u32 %v2567, %v2569
    %v2572 = vmul.u32 %v2567, %v2570
    %v2573 = vmul.u32 %v2568, %v2569
    %v2574 = vmul.u32 %v2568, %v2570
    %v2575 = vshll.u32 %v2572, 16
    %v2576 = vshrl.u32 %v2572, 16
    %v2577 = vshll.u32 %v2573, 16
    %v2578 = vshrl.u32 %v2573, 16
    %vm2579 = vc.u32 %v2571, %v2575
    %v2580 = vsel %vm2579, 1, 0
    %v2581 = vadd.s32 %v2571, %v2575
    %v2582 = vadd.s32 %v2574, %v2580
    %vm2583 = vc.u32 %v2581, %v2577
    %v2584 = vsel %vm2583, 1, 0
    %v2585 = vadd.s32 %v2581, %v2577
    %v2586 = vadd.s32 %v2582, %v2584
    %v2587 = vadd.s32 %v2586, %v2576
    %v2588 = vadd.s32 %v2587, %v2578
    %v2589 = vmul.u32 %v2544, %v2535
    %v2590 = vadd.s32 %v2566, %v2585
    %vm2591 = vc.u32 %v2566, %v2585
    %v2592 = vadd.s32 %v2588, 1
    %v2593 = vsel %vm2591, %v2592, %v2588
    %v2594 = vadd.s32 %v2589, %v2593
    %v2595 = vadd.s32 %v2594, 536870912
    %v2596 = vshrl.u32 %v2595, 30
    %v2597 = vshll.u32 %v2596, 30
    %v2598 = vsub.s32 %v2594, %v2597
    %vm2599 = vcmp.lt.s32.totalorder %v2598, 0
    %v2600 = vsub.s32 0, %v2598
    %v2601 = vsel %vm2599, %v2600, %v2598
    %v2602 = vclz %v2601
    %v2603 = vsub.s32 %v2602, 2
    %vm2604 = vcmp.gt.s32.totalorder 0, %v2603
    %v2605 = vsel %vm2604, 0, %v2603
    %v2606 = vsub.s32 32, %v2605
    %v2607 = vshll.u32 %v2598, %v2605
    %v2608 = vshrl.u32 %v2590, %v2606
    %v2609 = vor.u32 %v2607, %v2608
    %v2610 = vsub.s32 4294967266, %v2605
    %v2611 = vadd.s32 %v2610, 127
    %v2612 = vshll.u32 %v2611, 23
    %v2613 = vor.u32 4788187, %v2612
    %v2614 = vand.u32 2147483647, %v2613
    %v2616 = vcvt.s32.f32 %v2609
    %v2617 = vmul.f32 %v2616, %v2614
    %v2618 = vxor.u32 %v2617, 2147483648
    %v2619 = vsel %vm2498, %v2618, %v2617
    %v2620 = vsub.s32 4, %v2596
    %v2621 = vsel %vm2498, %v2620, %v2596
    %v2622 = vsel %vm2497, %v301, %v2619
    %v2623 = vsel %vm2497, 0, %v2621
    %v2624 = vmul.f32 %v2622, %v2622
    %v2625 = vmul.f32 %v2624, -0.001358992
    %v2626 = vadd.f32 %v2625, 0.041655596
    %v2627 = vmul.f32 %v2624, %v2626
    %v2628 = vadd.f32 %v2627, -0.4999988
    %v2629 = vmul.f32 %v2624, %v2628
    %v2630 = vadd.f32 1.0, %v2629
    %v2631 = vmul.f32 %v2622, %v2622
    %v2632 = vmul.f32 %v2631, -0.00019511016
    %v2633 = vadd.f32 %v2632, 0.008332121
    %v2634 = vmul.f32 %v2631, %v2633
    %v2635 = vadd.f32 %v2634, -0.16666654
    %v2636 = vmul.f32 %v2631, %v2635
    %v2637 = vadd.f32 %v2636, 1.0
    %v2638 = vmul.f32 %v2637, %v2622
    %vm2639 = vweird.f32 %v301
    %v2640 = vadd.s32 %v2623, 3
    %v2641 = vand.u32 %v2640, 3
    %vm2642 = vcmp.lt.s32.totalorder %v2641, 2
    %vm2643 = vcmp.eq.s32.totalorder %v2641, 0
    %v2644 = vxor.u32 %v2638, 2147483648
    %v2645 = vsel %vm2643, %v2630, %v2644
    %vm2646 = vcmp.eq.s32.totalorder %v2641, 2
    %v2647 = vxor.u32 %v2630, 2147483648
    %v2648 = vsel %vm2646, %v2647, %v2638
    %v2649 = vsel %vm2642, %v2645, %v2648
    %v2650 = vsel %vm2639, nan, %v2649
    %v2651 = vand.u32 2147483647, %v324
    %vm2652 = vcmp.le.f32.partialorder %v2651, 0.7853982
    %vm2653 = vcmp.lt.s32.totalorder %v324, 0
    %v2654 = vand.u32 %v324, 2139095040
    %v2655 = vshrl.u32 %v2654, 23
    %v2656 = vsub.s32 %v2655, 127
    %v2657 = vand.u32 2147483647, %v324
    %v2658 = vand.u32 %v2657, 8388607
    %v2659 = vor.u32 %v2658, 8388608
    %v2660 = vsub.s32 0, %v2659
    %v2661 = vadd.s32 %v2656, 1
    %vm2662 = vcmp.gt.s32.totalorder %v2661, 0
    %v2663 = vsel %vm2662, %v2661, 0
    %v2664 = vshrl.u32 %v2663, 5
    %v2665 = vand.u32 %v2663, 31
    %v2666 = vsub.s32 32, %v2665
    %v2667 = vshrl.u32 683565275, %v2666
    %v2668 = vshll.u32 683565275, %v2665
    %v2669 = vshrl.u32 2475754826, %v2666
    %v2670 = vor.u32 %v2668, %v2669
    %v2671 = vshll.u32 2475754826, %v2665
    %v2672 = vshrl.u32 2131351028, %v2666
    %v2673 = vor.u32 %v2671, %v2672
    %v2674 = vshll.u32 2131351028, %v2665
    %v2675 = vshrl.u32 2102212464, %v2666
    %v2676 = vor.u32 %v2674, %v2675
    %v2677 = vshll.u32 2102212464, %v2665
    %v2678 = vshrl.u32 920167782, %v2666
    %v2679 = vor.u32 %v2677, %v2678
    %v2680 = vshll.u32 920167782, %v2665
    %v2681 = vshrl.u32 1326507024, %v2666
    %v2682 = vor.u32 %v2680, %v2681
    %vm2683 = vcmp.lt.s32.totalorder %v2664, 1
    %vm2684 = vcmp.lt.s32.totalorder %v2664, 2
    %vm2685 = vcmp.lt.s32.totalorder %v2664, 3
    %vm2686 = vcmp.lt.s32.totalorder %v2664, 4
    %v2687 = vsel %vm2683, %v2667, %v2670
    %v2688 = vsel %vm2686, %v2676, 2102212464
    %v2689 = vsel %vm2685, %v2673, %v2688
    %v2690 = vsel %vm2684, %v2687, %v2689
    %v2691 = vsel %vm2683, %v2670, %v2673
    %v2692 = vsel %vm2686, %v2679, 920167782
    %v2693 = vsel %vm2685, %v2676, %v2692
    %v2694 = vsel %vm2684, %v2691, %v2693
    %v2695 = vsel %vm2683, %v2673, %v2676
    %v2696 = vsel %vm2686, %v2682, 1326507024
    %v2697 = vsel %vm2685, %v2679, %v2696
    %v2698 = vsel %vm2684, %v2695, %v2697
    %v2699 = vshll.u32 %v2659, 8
    %v2700 = vand.u32 %v2699, 65535
    %v2701 = vshrl.u32 %v2699, 16
    %v2702 = vand.u32 %v2698, 65535
    %v2703 = vshrl.u32 %v2698, 16
    %v2704 = vmul.u32 %v2700, %v2702
    %v2705 = vmul.u32 %v2700, %v2703
    %v2706 = vmul.u32 %v2701, %v2702
    %v2707 = vmul.u32 %v2701, %v2703
    %v2708 = vshll.u32 %v2705, 16
    %v2709 = vshrl.u32 %v2705, 16
    %v2710 = vshll.u32 %v2706, 16
    %v2711 = vshrl.u32 %v2706, 16
    %vm2712 = vc.u32 %v2704, %v2708
    %v2713 = vsel %vm2712, 1, 0
    %v2714 = vadd.s32 %v2704, %v2708
    %v2715 = vadd.s32 %v2707, %v2713
    %vm2716 = vc.u32 %v2714, %v2710
    %v2717 = vsel %vm2716, 1, 0
    %v2718 = vadd.s32 %v2714, %v2710
    %v2719 = vadd.s32 %v2715, %v2717
    %v2720 = vadd.s32 %v2719, %v2709
    %v2721 = vadd.s32 %v2720, %v2711
    %v2722 = vand.u32 %v2699, 65535
    %v2723 = vshrl.u32 %v2699, 16
    %v2724 = vand.u32 %v2694, 65535
    %v2725 = vshrl.u32 %v2694, 16
    %v2726 = vmul.u32 %v2722, %v2724
    %v2727 = vmul.u32 %v2722, %v2725
    %v2728 = vmul.u32 %v2723, %v2724
    %v2729 = vmul.u32 %v2723, %v2725
    %v2730 = vshll.u32 %v2727, 16
    %v2731 = vshrl.u32 %v2727, 16
    %v2732 = vshll.u32 %v2728, 16
    %v2733 = vshrl.u32 %v2728, 16
    %vm2734 = vc.u32 %v2726, %v2730
    %v2735 = vsel %vm2734, 1, 0
    %v2736 = vadd.s32 %v2726, %v2730
    %v2737 = vadd.s32 %v2729, %v2735
    %vm2738 = vc.u32 %v2736, %v2732
    %v2739 = vsel %vm2738, 1, 0
    %v2740 = vadd.s32 %v2736, %v2732
    %v2741 = vadd.s32 %v2737, %v2739
    %v2742 = vadd.s32 %v2741, %v2731
    %v2743 = vadd.s32 %v2742, %v2733
    %v2744 = vmul.u32 %v2699, %v2690
    %v2745 = vadd.s32 %v2721, %v2740
    %vm2746 = vc.u32 %v2721, %v2740
    %v2747 = vadd.s32 %v2743, 1
    %v2748 = vsel %vm2746, %v2747, %v2743
    %v2749 = vadd.s32 %v2744, %v2748
    %v2750 = vadd.s32 %v2749, 536870912
    %v2751 = vshrl.u32 %v2750, 30
    %v2752 = vshll.u32 %v2751, 30
    %v2753 = vsub.s32 %v2749, %v2752
    %vm2754 = vcmp.lt.s32.totalorder %v2753, 0
    %v2755 = vsub.s32 0, %v2753
    %v2756 = vsel %vm2754, %v2755, %v2753
    %v2757 = vclz %v2756
    %v2758 = vsub.s32 %v2757, 2
    %vm2759 = vcmp.gt.s32.totalorder 0, %v2758
    %v2760 = vsel %vm2759, 0, %v2758
    %v2761 = vsub.s32 32, %v2760
    %v2762 = vshll.u32 %v2753, %v2760
    %v2763 = vshrl.u32 %v2745, %v2761
    %v2764 = vor.u32 %v2762, %v2763
    %v2765 = vsub.s32 4294967266, %v2760
    %v2766 = vadd.s32 %v2765, 127
    %v2767 = vshll.u32 %v2766, 23
    %v2768 = vor.u32 4788187, %v2767
    %v2769 = vand.u32 2147483647, %v2768
    %v2771 = vcvt.s32.f32 %v2764
    %v2772 = vmul.f32 %v2771, %v2769
    %v2773 = vxor.u32 %v2772, 2147483648
    %v2774 = vsel %vm2653, %v2773, %v2772
    %v2775 = vsub.s32 4, %v2751
    %v2776 = vsel %vm2653, %v2775, %v2751
    %v2777 = vsel %vm2652, %v324, %v2774
    %v2778 = vsel %vm2652, 0, %v2776
    %v2779 = vmul.f32 %v2777, %v2777
    %v2780 = vmul.f32 %v2779, -0.001358992
    %v2781 = vadd.f32 %v2780, 0.041655596
    %v2782 = vmul.f32 %v2779, %v2781
    %v2783 = vadd.f32 %v2782, -0.4999988
    %v2784 = vmul.f32 %v2779, %v2783
    %v2785 = vadd.f32 1.0, %v2784
    %v2786 = vmul.f32 %v2777, %v2777
    %v2787 = vmul.f32 %v2786, -0.00019511016
    %v2788 = vadd.f32 %v2787, 0.008332121
    %v2789 = vmul.f32 %v2786, %v2788
    %v2790 = vadd.f32 %v2789, -0.16666654
    %v2791 = vmul.f32 %v2786, %v2790
    %v2792 = vadd.f32 %v2791, 1.0
    %v2793 = vmul.f32 %v2792, %v2777
    %vm2794 = vweird.f32 %v324
    %v2795 = vadd.s32 %v2778, 3
    %v2796 = vand.u32 %v2795, 3
    %vm2797 = vcmp.lt.s32.totalorder %v2796, 2
    %vm2798 = vcmp.eq.s32.totalorder %v2796, 0
    %v2799 = vxor.u32 %v2793, 2147483648
    %v2800 = vsel %vm2798, %v2785, %v2799
    %vm2801 = vcmp.eq.s32.totalorder %v2796, 2
    %v2802 = vxor.u32 %v2785, 2147483648
    %v2803 = vsel %vm2801, %v2802, %v2793
    %v2804 = vsel %vm2797, %v2800, %v2803
    %v2805 = vsel %vm2794, nan, %v2804
    %2806 = vst [vmem:[#allocation7] sm:$0xff] %v480
    %2807 = vst [vmem:[#allocation7 + $0x8] sm:$0xff] %v635
    %2808 = vst [vmem:[#allocation7 + $0x10] sm:$0xff] %v790
    %2809 = vst [vmem:[#allocation7 + $0x18] sm:$0xff] %v945
    %2810 = vst [vmem:[#allocation7 + $0x20] sm:$0xff] %v1100
    %2811 = vst [vmem:[#allocation7 + $0x28] sm:$0xff] %v1255
    %2812 = vst [vmem:[#allocation7 + $0x30] sm:$0xff] %v1410
    %2813 = vst [vmem:[#allocation7 + $0x38] sm:$0xff] %v1565
    %2814 = vst [vmem:[#allocation7 + $0x40] sm:$0xff] %v1720
    %2815 = vst [vmem:[#allocation7 + $0x48] sm:$0xff] %v1875
    %2816 = vst [vmem:[#allocation7 + $0x50] sm:$0xff] %v2030
    %2817 = vst [vmem:[#allocation7 + $0x58] sm:$0xff] %v2185
    %2818 = vst [vmem:[#allocation7 + $0x60] sm:$0xff] %v2340
    %2819 = vst [vmem:[#allocation7 + $0x68] sm:$0xff] %v2495
    %2820 = vst [vmem:[#allocation7 + $0x70] sm:$0xff] %v2650
    %2821 = vst [vmem:[#allocation7 + $0x78] sm:$0xff] %v2805
    // Predicated region
    $region18: #{tpu_custom_call.1} parent=1 // pred_check
      _
    $region19: #{tpu_custom_call.1} parent=1 // pred_check_branch
      %2823 = sbr.rel (0) target = $region21
    $region20: #{tpu_custom_call.1} parent=1 // pred_region
      %2825 = vsyncadd [#allocation4], 0
      %s2826 = sshll.u32 [#allocation7], 4
      %s2827 = int_to_ptr.vmem [resolvable:$true] %s2826
      %s2828 = sshll.u32 %s2, 4
      %s2829 = int_to_ptr.hbm [resolvable:$true] %s2828
      %2834 = dma.vmem_to_hbm [thread:$0]  %s2827, 2048, %s2829, [#allocation4], 1024, 1024, 64
    $region21: #{tpu_custom_call.1} parent=1 // pred_fallthru
      _
    // Predicated region
    $region22: #{tpu_custom_call.1} parent=1 // pred_check
      _
    $region23: #{tpu_custom_call.1} parent=1 // pred_check_branch
      %2836 = sbr.rel (0) target = $region25
    $region24: #{tpu_custom_call.1} parent=1 // pred_region
      %2838 = dma.done [#allocation4], 2048
    $region25: #{tpu_custom_call.1} parent=1 // pred_fallthru
      _
    %2839 = vsyncpa [#allocation3], 1
    %2840 = vsyncpa [#allocation6], 1
    %2841 = vsyncpa [#allocation4], 1

</llo_original>
